<compile_context>
chip_gen: v5e
topology: v5e:2x2
jax: 0.10.0
libtpu: 0.0.40
codegen_flags: <defaults>
</compile_context>

<pallas_src>
import jax
import jax.numpy as jnp
from jax.experimental import pallas as pl
from jax.experimental.pallas import tpu as pltpu


def _round_up(x, m):
    return ((x + m - 1) // m) * m


def _round_down(x, m):
    return (x // m) * m


def _make_kernel(dt_split, compute_dtype):
    def kernel(xt_ref, xs_ref, w1_ref, b1_ref, w2_ref, b2_ref, o_ref):
        # xt_ref: [tb, DT]  xs_ref: [tb, DS]
        # w1_ref: [DT+DS, H]  b1_ref: [1, H] (f32)
        # w2_ref: [H, O_pad]  b2_ref: [1, O_pad] (f32)
        # o_ref:  [tb, O_pad]
        xt = xt_ref[...]
        xs = xs_ref[...]
        if compute_dtype is not None:
            # Cast on the VPU inside the kernel (hidden under DMA/MXU) instead of
            # a separate XLA cast pass over the full [B, D] activations.
            xt = xt.astype(compute_dtype)
            xs = xs.astype(compute_dtype)
        # Layer 1: split-K matmul == matmul over the concatenated features.
        # Static views of the resident W1 on a sublane-aligned boundary are free.
        h = jnp.dot(xt, w1_ref[0:dt_split, :], preferred_element_type=jnp.float32)
        h += jnp.dot(xs, w1_ref[dt_split:, :], preferred_element_type=jnp.float32)
        h = jnp.maximum(h + b1_ref[...], 0.0)                 # bias + ReLU in f32
        # Layer 2: downcast h only at the MXU input; accumulate + bias in f32.
        out = jnp.dot(h.astype(w2_ref.dtype), w2_ref[...],
                      preferred_element_type=jnp.float32) + b2_ref[...]
        o_ref[...] = out.astype(o_ref.dtype)

    return kernel


def _vmem_bytes(tb, dt, ds, h, o, act_isz, out_isz, w_isz):
    # Conservative: assume double-buffering everywhere (even if Buffered(1) lands).
    acts = 2 * tb * (dt + ds) * act_isz              # pipelined activation tiles
    outs = 2 * tb * o * out_isz                      # pipelined output tile
    weights = 2 * ((dt + ds) * h + h * o) * w_isz    # resident weights
    biases = 2 * (h + o) * 4                         # resident f32 biases
    inter = tb * h * 4 + tb * o * 4                  # f32 hidden + f32 out temporaries
    if w_isz < act_isz:                              # low-precision copies fed to MXU
        inter += tb * (dt + ds + h) * w_isz
    return acts + outs + weights + biases + inter


def _vmem_budget():
    try:
        cap = int(pltpu.get_tpu_info().vmem_capacity_bytes)
    except Exception:
        cap = 64 << 20                               # conservative fallback (v7x-sized)
    budget = max(int(cap * 3 // 4) - (2 << 20), 16 << 20)
    return budget, cap


def joint_projection_head(text_emb, struct_emb, w1, b1, w2, b2, *,
                          block_b=None, compute_dtype=None):
    """Forward pass of JointProjectionHead via a single Pallas TPU kernel.

    text_emb: [B, DT], struct_emb: [B, DS], w1: [DT+DS, H], b1: [H],
    w2: [H, O], b2: [O].  Returns [B, O] in text_emb.dtype.
    For production, callers can pass bf16 weights (or compute_dtype=jnp.bfloat16)
    to hit the full-rate MXU on v6e/v7x; accumulation stays f32 either way.
    """
    B, DT = text_emb.shape
    DS = struct_emb.shape[1]
    D, H = w1.shape
    O = w2.shape[1]
    if D != DT + DS:
        raise ValueError(f"w1 first dim {D} != DT+DS = {DT + DS}")
    out_dtype = text_emb.dtype

    # Weights: cast once in the wrapper (tiny, resident); activations cast in-kernel.
    if compute_dtype is not None:
        w1 = w1.astype(compute_dtype)
        w2 = w2.astype(compute_dtype)

    # Lane-density guard: pad output features (weights/bias columns only) to 128.
    O_pad = _round_up(O, 128)
    if O_pad != O:
        w2 = jnp.pad(w2, ((0, 0), (0, O_pad - O)))
        b2 = jnp.pad(b2, ((0, O_pad - O),))

    b1_2d = b1.reshape(1, H).astype(jnp.float32)
    b2_2d = b2.reshape(1, O_pad).astype(jnp.float32)

    act_isz = jnp.dtype(text_emb.dtype).itemsize
    out_isz = jnp.dtype(out_dtype).itemsize
    w_isz = jnp.dtype(w2.dtype).itemsize

    budget, cap = _vmem_budget()

    # Sublane multiple for the batch tile follows the narrowest stored dtype.
    min_isz = min(act_isz, out_isz)
    sub = 8 if min_isz >= 4 else (16 if min_isz == 2 else 32)

    if B <= sub:
        tb = B                                        # full-array block (always legal)
    else:
        tb = block_b if block_b is not None else 1024
        tb = max(sub, _round_down(tb, sub))
        tb = min(tb, _round_up(B, sub))
        # Keep >= 2 grid steps so the batch axis can shard across v7x's 2 TCs.
        tb = min(tb, _round_up(-(-B // 2), sub))
        while tb > sub and _vmem_bytes(tb, DT, DS, H, O_pad,
                                       act_isz, out_isz, w_isz) > budget:
            tb = max(sub, _round_down(tb // 2, sub))

    grid = (-(-B // tb),)

    est = _vmem_bytes(tb, DT, DS, H, O_pad, act_isz, out_isz, w_isz)
    vmem_limit = int(min(cap, max(est + (8 << 20), 32 << 20)))

    kernel = _make_kernel(DT, compute_dtype)

    def build(single_buffer_weights):
        res_kw = {}
        if single_buffer_weights:
            # Constant-index blocks are DMA'd once; single-buffer them to halve
            # the resident weight footprint (most valuable on v7x's 64 MiB VMEM).
            res_kw = dict(pipeline_mode=pl.Buffered(1))
        in_specs = [
            pl.BlockSpec((tb, DT), lambda i: (i, 0)),              # text tile
            pl.BlockSpec((tb, DS), lambda i: (i, 0)),              # struct tile
            pl.BlockSpec((D, H), lambda i: (0, 0), **res_kw),      # W1 (whole, resident)
            pl.BlockSpec((1, H), lambda i: (0, 0), **res_kw),      # b1
            pl.BlockSpec((H, O_pad), lambda i: (0, 0), **res_kw),  # W2 (resident)
            pl.BlockSpec((1, O_pad), lambda i: (0, 0), **res_kw),  # b2
        ]
        return pl.pallas_call(
            kernel,
            out_shape=jax.ShapeDtypeStruct((B, O_pad), out_dtype),
            grid_spec=pltpu.PrefetchScalarGridSpec(
                num_scalar_prefetch=0,
                grid=grid,
                in_specs=in_specs,
                out_specs=pl.BlockSpec((tb, O_pad), lambda i: (i, 0)),  # lane-dense
            ),
            compiler_params=pltpu.CompilerParams(
                dimension_semantics=("parallel",),   # shard batch grid across TCs
                vmem_limit_bytes=vmem_limit,
            ),
        )

    args = (text_emb, struct_emb, w1, b1_2d, w2, b2_2d)
    out = None
    if hasattr(pl, "Buffered"):
        try:
            out = build(True)(*args)
        except Exception:
            out = None                 # fall back to default double-buffered specs
    if out is None:
        out = build(False)(*args)

    if O_pad != O:
        out = out[:, :O]
    return out


def _reference(text_emb, struct_emb, w1, b1, w2, b2):
    joint = jnp.concatenate([text_emb, struct_emb], axis=-1)
    h = jnp.maximum(joint @ w1 + b1, 0.0)
    return h @ w2 + b2


if __name__ == "__main__":
    # Small shapes consistent with the module (scaled-down defaults):
    # per-modality dim 256 (input_dim = 512), hidden_dim = 256, output_dim = 128.
    B, DT, DS, H, O = 16, 256, 256, 256, 128
    D = DT + DS

    key = jax.random.PRNGKey(0)
    k_t, k_s, k_w1, k_b1, k_w2, k_b2 = jax.random.split(key, 6)

    text_emb = jax.random.normal(k_t, (B, DT), dtype=jnp.float32)
    struct_emb = jax.random.normal(k_s, (B, DS), dtype=jnp.float32)

    # Deterministic synthetic parameters (uniform init mimicking nn.Linear scale).
    w1 = jax.random.uniform(k_w1, (D, H), minval=-1.0, maxval=1.0) / jnp.sqrt(D)
    b1 = jax.random.uniform(k_b1, (H,), minval=-1.0, maxval=1.0) / jnp.sqrt(D)
    w2 = jax.random.uniform(k_w2, (H, O), minval=-1.0, maxval=1.0) / jnp.sqrt(H)
    b2 = jax.random.uniform(k_b2, (O,), minval=-1.0, maxval=1.0) / jnp.sqrt(H)

    # f32 path: numerically matches the reference (f32 accumulation on both dots).
    out = joint_projection_head(text_emb, struct_emb, w1, b1, w2, b2)
    out = jax.block_until_ready(out)

    ref = _reference(text_emb, struct_emb, w1, b1, w2, b2)
    assert out.shape == (B, O), out.shape
    assert jnp.allclose(out, ref, atol=1e-4, rtol=1e-4), "mismatch vs reference"

    # bf16 compute path (full-rate MXU on v6e/v7x): exercise compile/run; the
    # tolerance is inherently looser so only sanity-check it here.
    out_bf16 = joint_projection_head(text_emb, struct_emb, w1, b1, w2, b2,
                                     compute_dtype=jnp.bfloat16)
    out_bf16 = jax.block_until_ready(out_bf16)
    assert out_bf16.shape == (B, O), out_bf16.shape
    assert bool(jnp.all(jnp.isfinite(out_bf16.astype(jnp.float32))))
    assert jnp.allclose(out_bf16, ref, atol=0.2, rtol=0.2)

    print("KERNEL_OK")
</pallas_src>

<mosaic_0001>
module attributes {stable_mosaic.version = 11 : i64} {
  func.func @kernel(%arg0: i32, %arg1: memref<8x256xf32, #tpu.memory_space<vmem>>, %arg2: memref<8x256xf32, #tpu.memory_space<vmem>>, %arg3: memref<512x256xf32, #tpu.memory_space<vmem>>, %arg4: memref<1x256xf32, #tpu.memory_space<vmem>>, %arg5: memref<256x128xf32, #tpu.memory_space<vmem>>, %arg6: memref<1x128xf32, #tpu.memory_space<vmem>>, %arg7: memref<8x128xf32, #tpu.memory_space<vmem>>) attributes {dimension_semantics = [#tpu.dimension_semantics<parallel>], iteration_bounds = array<i64: 2>, scalar_prefetch = 0 : i64, scratch_operands = 0 : i64, tpu.core_type = #tpu.core_type<tc>, window_params = [{transform_indices = @transform_0, window_bounds = array<i64: 8, 256>}, {transform_indices = @transform_1, window_bounds = array<i64: 8, 256>}, {pipeline_mode = #tpu.pipeline_mode<synchronous>, transform_indices = @transform_2, window_bounds = array<i64: 512, 256>}, {pipeline_mode = #tpu.pipeline_mode<synchronous>, transform_indices = @transform_3, window_bounds = array<i64: 1, 256>}, {pipeline_mode = #tpu.pipeline_mode<synchronous>, transform_indices = @transform_4, window_bounds = array<i64: 256, 128>}, {pipeline_mode = #tpu.pipeline_mode<synchronous>, transform_indices = @transform_5, window_bounds = array<i64: 1, 128>}, {transform_indices = @transform_6, window_bounds = array<i64: 8, 128>}]} {
    %c0 = arith.constant 0 : index
    %c0_0 = arith.constant 0 : index
    %0 = vector.load %arg1[%c0, %c0_0] : memref<8x256xf32, #tpu.memory_space<vmem>>, vector<8x256xf32>
    %c0_1 = arith.constant 0 : index
    %c0_2 = arith.constant 0 : index
    %1 = vector.load %arg2[%c0_1, %c0_2] : memref<8x256xf32, #tpu.memory_space<vmem>>, vector<8x256xf32>
    %c0_3 = arith.constant 0 : index
    %c0_4 = arith.constant 0 : index
    %2 = vector.load %arg3[%c0_3, %c0_4] : memref<512x256xf32, #tpu.memory_space<vmem>>, vector<256x256xf32>
    %cst = arith.constant dense<0.000000e+00> : vector<8x256xf32>
    %3 = tpu.matmul %0, %2, %cst {dimension_numbers = #tpu.dot_dimension_numbers<[1], [0], [0], [1], [0, 0, 1, 1], [], []>} : vector<8x256xf32>, vector<256x256xf32>, vector<8x256xf32> -> vector<8x256xf32>
    %c256 = arith.constant 256 : index
    %c0_5 = arith.constant 0 : index
    %4 = vector.load %arg3[%c256, %c0_5] : memref<512x256xf32, #tpu.memory_space<vmem>>, vector<256x256xf32>
    %cst_6 = arith.constant dense<0.000000e+00> : vector<8x256xf32>
    %5 = tpu.matmul %1, %4, %cst_6 {dimension_numbers = #tpu.dot_dimension_numbers<[1], [0], [0], [1], [0, 0, 1, 1], [], []>} : vector<8x256xf32>, vector<256x256xf32>, vector<8x256xf32> -> vector<8x256xf32>
    %6 = arith.addf %3, %5 : vector<8x256xf32>
    %c0_7 = arith.constant 0 : index
    %c0_8 = arith.constant 0 : index
    %7 = vector.load %arg4[%c0_7, %c0_8] : memref<1x256xf32, #tpu.memory_space<vmem>>, vector<1x256xf32>
    %8 = vector.broadcast %7 : vector<1x256xf32> to vector<8x256xf32>
    %9 = arith.addf %6, %8 : vector<8x256xf32>
    %cst_9 = arith.constant 0.000000e+00 : f32
    %10 = vector.broadcast %cst_9 : f32 to vector<8x256xf32>
    %11 = arith.maximumf %9, %10 : vector<8x256xf32>
    %c0_10 = arith.constant 0 : index
    %c0_11 = arith.constant 0 : index
    %12 = vector.load %arg5[%c0_10, %c0_11] : memref<256x128xf32, #tpu.memory_space<vmem>>, vector<256x128xf32>
    %cst_12 = arith.constant dense<0.000000e+00> : vector<8x128xf32>
    %13 = tpu.matmul %11, %12, %cst_12 {dimension_numbers = #tpu.dot_dimension_numbers<[1], [0], [0], [1], [0, 0, 1, 1], [], []>} : vector<8x256xf32>, vector<256x128xf32>, vector<8x128xf32> -> vector<8x128xf32>
    %c0_13 = arith.constant 0 : index
    %c0_14 = arith.constant 0 : index
    %14 = vector.load %arg6[%c0_13, %c0_14] : memref<1x128xf32, #tpu.memory_space<vmem>>, vector<1x128xf32>
    %15 = vector.broadcast %14 : vector<1x128xf32> to vector<8x128xf32>
    %16 = arith.addf %13, %15 : vector<8x128xf32>
    %c0_15 = arith.constant 0 : index
    %c0_16 = arith.constant 0 : index
    %17 = vector.load %arg7[%c0_15, %c0_16] : memref<8x128xf32, #tpu.memory_space<vmem>>, vector<8x128xf32>
    tpu.vector_store %arg7[%c0_15, %c0_16], %16 {strides = array<i32>} : memref<8x128xf32, #tpu.memory_space<vmem>>, vector<8x128xf32>,
    return
  }
  func.func @transform_0(%arg0: i32) -> (i32, i32) {
    %c0_i32 = arith.constant 0 : i32
    %c0_i32_0 = arith.constant 0 : i32
    return %arg0, %c0_i32 : i32, i32
  }
  func.func @transform_1(%arg0: i32) -> (i32, i32) {
    %c0_i32 = arith.constant 0 : i32
    %c0_i32_0 = arith.constant 0 : i32
    return %arg0, %c0_i32 : i32, i32
  }
  func.func @transform_2(%arg0: i32) -> (i32, i32) {
    %c0_i32 = arith.constant 0 : i32
    %c0_i32_0 = arith.constant 0 : i32
    %c0_i32_1 = arith.constant 0 : i32
    return %c0_i32, %c0_i32_0 : i32, i32
  }
  func.func @transform_3(%arg0: i32) -> (i32, i32) {
    %c0_i32 = arith.constant 0 : i32
    %c0_i32_0 = arith.constant 0 : i32
    %c0_i32_1 = arith.constant 0 : i32
    return %c0_i32, %c0_i32_0 : i32, i32
  }
  func.func @transform_4(%arg0: i32) -> (i32, i32) {
    %c0_i32 = arith.constant 0 : i32
    %c0_i32_0 = arith.constant 0 : i32
    %c0_i32_1 = arith.constant 0 : i32
    return %c0_i32, %c0_i32_0 : i32, i32
  }
  func.func @transform_5(%arg0: i32) -> (i32, i32) {
    %c0_i32 = arith.constant 0 : i32
    %c0_i32_0 = arith.constant 0 : i32
    %c0_i32_1 = arith.constant 0 : i32
    return %c0_i32, %c0_i32_0 : i32, i32
  }
  func.func @transform_6(%arg0: i32) -> (i32, i32) {
    %c0_i32 = arith.constant 0 : i32
    %c0_i32_0 = arith.constant 0 : i32
    return %arg0, %c0_i32 : i32, i32
  }
}

module attributes {stable_mosaic.version = 11 : i64} {
  func.func @kernel(%arg0: i32, %arg1: memref<8x256xf32, #tpu.memory_space<vmem>>, %arg2: memref<8x256xf32, #tpu.memory_space<vmem>>, %arg3: memref<512x256xf32, #tpu.memory_space<vmem>>, %arg4: memref<1x256xf32, #tpu.memory_space<vmem>>, %arg5: memref<256x128xf32, #tpu.memory_space<vmem>>, %arg6: memref<1x128xf32, #tpu.memory_space<vmem>>, %arg7: memref<8x128xf32, #tpu.memory_space<vmem>>) attributes {dimension_semantics = [#tpu.dimension_semantics<parallel>], iteration_bounds = array<i64: 2>, scalar_prefetch = 0 : i64, scratch_operands = 0 : i64, tpu.core_type = #tpu.core_type<tc>, window_params = [{transform_indices = @transform_0, window_bounds = array<i64: 8, 256>}, {transform_indices = @transform_1, window_bounds = array<i64: 8, 256>}, {pipeline_mode = #tpu.pipeline_mode<synchronous>, transform_indices = @transform_2, window_bounds = array<i64: 512, 256>}, {pipeline_mode = #tpu.pipeline_mode<synchronous>, transform_indices = @transform_3, window_bounds = array<i64: 1, 256>}, {pipeline_mode = #tpu.pipeline_mode<synchronous>, transform_indices = @transform_4, window_bounds = array<i64: 256, 128>}, {pipeline_mode = #tpu.pipeline_mode<synchronous>, transform_indices = @transform_5, window_bounds = array<i64: 1, 128>}, {transform_indices = @transform_6, window_bounds = array<i64: 8, 128>}]} {
    %c0 = arith.constant 0 : index
    %c0_0 = arith.constant 0 : index
    %0 = vector.load %arg1[%c0, %c0_0] : memref<8x256xf32, #tpu.memory_space<vmem>>, vector<8x256xf32>
    %c0_1 = arith.constant 0 : index
    %c0_2 = arith.constant 0 : index
    %1 = vector.load %arg2[%c0_1, %c0_2] : memref<8x256xf32, #tpu.memory_space<vmem>>, vector<8x256xf32>
    %c0_3 = arith.constant 0 : index
    %c0_4 = arith.constant 0 : index
    %2 = vector.load %arg3[%c0_3, %c0_4] : memref<512x256xf32, #tpu.memory_space<vmem>>, vector<256x256xf32>
    %cst = arith.constant dense<0.000000e+00> : vector<8x256xf32>
    %3 = tpu.matmul %0, %2, %cst {dimension_numbers = #tpu.dot_dimension_numbers<[1], [0], [0], [1], [0, 0, 1, 1], [], []>} : vector<8x256xf32>, vector<256x256xf32>, vector<8x256xf32> -> vector<8x256xf32>
    %c256 = arith.constant 256 : index
    %c0_5 = arith.constant 0 : index
    %4 = vector.load %arg3[%c256, %c0_5] : memref<512x256xf32, #tpu.memory_space<vmem>>, vector<256x256xf32>
    %cst_6 = arith.constant dense<0.000000e+00> : vector<8x256xf32>
    %5 = tpu.matmul %1, %4, %cst_6 {dimension_numbers = #tpu.dot_dimension_numbers<[1], [0], [0], [1], [0, 0, 1, 1], [], []>} : vector<8x256xf32>, vector<256x256xf32>, vector<8x256xf32> -> vector<8x256xf32>
    %6 = arith.addf %3, %5 : vector<8x256xf32>
    %c0_7 = arith.constant 0 : index
    %c0_8 = arith.constant 0 : index
    %7 = vector.load %arg4[%c0_7, %c0_8] : memref<1x256xf32, #tpu.memory_space<vmem>>, vector<1x256xf32>
    %8 = vector.broadcast %7 : vector<1x256xf32> to vector<8x256xf32>
    %9 = arith.addf %6, %8 : vector<8x256xf32>
    %cst_9 = arith.constant 0.000000e+00 : f32
    %10 = vector.broadcast %cst_9 : f32 to vector<8x256xf32>
    %11 = arith.maximumf %9, %10 : vector<8x256xf32>
    %c0_10 = arith.constant 0 : index
    %c0_11 = arith.constant 0 : index
    %12 = vector.load %arg5[%c0_10, %c0_11] : memref<256x128xf32, #tpu.memory_space<vmem>>, vector<256x128xf32>
    %cst_12 = arith.constant dense<0.000000e+00> : vector<8x128xf32>
    %13 = tpu.matmul %11, %12, %cst_12 {dimension_numbers = #tpu.dot_dimension_numbers<[1], [0], [0], [1], [0, 0, 1, 1], [], []>} : vector<8x256xf32>, vector<256x128xf32>, vector<8x128xf32> -> vector<8x128xf32>
    %c0_13 = arith.constant 0 : index
    %c0_14 = arith.constant 0 : index
    %14 = vector.load %arg6[%c0_13, %c0_14] : memref<1x128xf32, #tpu.memory_space<vmem>>, vector<1x128xf32>
    %15 = vector.broadcast %14 : vector<1x128xf32> to vector<8x128xf32>
    %16 = arith.addf %13, %15 : vector<8x128xf32>
    %c0_15 = arith.constant 0 : index
    %c0_16 = arith.constant 0 : index
    %17 = vector.load %arg7[%c0_15, %c0_16] : memref<8x128xf32, #tpu.memory_space<vmem>>, vector<8x128xf32>
    tpu.vector_store %arg7[%c0_15, %c0_16], %16 {strides = array<i32>} : memref<8x128xf32, #tpu.memory_space<vmem>>, vector<8x128xf32>,
    return
  }
  func.func @transform_0(%arg0: i32) -> (i32, i32) {
    %c0_i32 = arith.constant 0 : i32
    %c0_i32_0 = arith.constant 0 : i32
    return %arg0, %c0_i32 : i32, i32
  }
  func.func @transform_1(%arg0: i32) -> (i32, i32) {
    %c0_i32 = arith.constant 0 : i32
    %c0_i32_0 = arith.constant 0 : i32
    return %arg0, %c0_i32 : i32, i32
  }
  func.func @transform_2(%arg0: i32) -> (i32, i32) {
    %c0_i32 = arith.constant 0 : i32
    %c0_i32_0 = arith.constant 0 : i32
    %c0_i32_1 = arith.constant 0 : i32
    return %c0_i32, %c0_i32_0 : i32, i32
  }
  func.func @transform_3(%arg0: i32) -> (i32, i32) {
    %c0_i32 = arith.constant 0 : i32
    %c0_i32_0 = arith.constant 0 : i32
    %c0_i32_1 = arith.constant 0 : i32
    return %c0_i32, %c0_i32_0 : i32, i32
  }
  func.func @transform_4(%arg0: i32) -> (i32, i32) {
    %c0_i32 = arith.constant 0 : i32
    %c0_i32_0 = arith.constant 0 : i32
    %c0_i32_1 = arith.constant 0 : i32
    return %c0_i32, %c0_i32_0 : i32, i32
  }
  func.func @transform_5(%arg0: i32) -> (i32, i32) {
    %c0_i32 = arith.constant 0 : i32
    %c0_i32_0 = arith.constant 0 : i32
    %c0_i32_1 = arith.constant 0 : i32
    return %c0_i32, %c0_i32_0 : i32, i32
  }
  func.func @transform_6(%arg0: i32) -> (i32, i32) {
    %c0_i32 = arith.constant 0 : i32
    %c0_i32_0 = arith.constant 0 : i32
    return %arg0, %c0_i32 : i32, i32
  }
}

</mosaic_0001>

<llo_original>
// kernel: tpu_custom_call.1
$region0: #{tpu_custom_call.1}
  #allocation0 [shape = 'u32[]', space=smem, size = 0x4, offset = 0x4, fixed_abs, tag = 'smem constant byte address 0x4 - core index']
  #allocation1 [shape = 'u32[72,128]{1,0:T(1,128)}', space=vmem, size = 0x9000, scoped, tag = 'internal scratch']
  %s0 = inlined_call_operand.hbm [shape: f32[16,256], index: 0, kind: input, shape index: {}]
  %s1 = inlined_call_operand.hbm [shape: f32[16,256], index: 1, kind: input, shape index: {}]
  %s2 = inlined_call_operand.hbm [shape: f32[512,256], index: 2, kind: input, shape index: {}]
  %s3 = inlined_call_operand.vmem [shape: f32[1,256], index: 3, kind: input, shape index: {}]
  %s4 = inlined_call_operand.hbm [shape: f32[256,128], index: 4, kind: input, shape index: {}]
  %s5 = inlined_call_operand.vmem [shape: f32[1,128], index: 5, kind: input, shape index: {}]
  %s6 = inlined_call_operand.hbm [shape: f32[16,128], index: 6, kind: output, shape index: {}]
  %s7 = sld [smem:[#allocation0]]
  $region73: #{tpu_custom_call.1} parent=0
    _
  %s9 = ssub.s32 1, %s7
  %s10 = scalar_select 0, %s9, %s7
  $region1: #{tpu_custom_call.1} parent=0
    #allocation2 [shape = 'u8[16384]{0}', space=vmem, size = 0x4000, scoped, tag = 'input window, operand 0']
    #allocation3 [shape = 's32[2]{0}', space=sflag, size = 0x8, scoped, tag = 'scoped memory for tpu_custom_call.1']
    #allocation4 [shape = 's32[2]{0}', space=sflag, size = 0x8, scoped, tag = 'scoped memory for tpu_custom_call.1']
    #allocation5 [shape = 'u8[16384]{0}', space=vmem, size = 0x4000, scoped, tag = 'input window, operand 1']
    #allocation6 [shape = 's32[2]{0}', space=sflag, size = 0x8, scoped, tag = 'scoped memory for tpu_custom_call.1']
    #allocation7 [shape = 'u8[524288]{0}', space=vmem, size = 0x80000, scoped, tag = 'input window, operand 2, single buffered']
    #allocation8 [shape = 'u8[131072]{0}', space=vmem, size = 0x20000, scoped, tag = 'input window, operand 4, single buffered']
    #allocation9 [shape = 's32[1]{0}', space=sflag, size = 0x4, scoped, tag = 'scoped memory for tpu_custom_call.1']
    #allocation10 [shape = 'u8[8192]{0}', space=vmem, size = 0x2000, scoped, tag = 'output window, operand 0']
    %11 = vsyncpa [#allocation3], 0
    %s12 = scalar_lea.sflag [#allocation3], 1
    %13 = vsyncpa %s12, 0
    %14 = vsyncpa [#allocation6], 0
    %s15 = scalar_lea.sflag [#allocation6], 1
    %16 = vsyncpa %s15, 0
    %17 = vsyncpa [#allocation9], 0
    %18 = vsyncpa [#allocation4], 0
    %s19 = scalar_lea.sflag [#allocation4], 1
    %20 = vsyncpa %s19, 0
    loop: start=0, step=1, limit=4
    $region2: #{tpu_custom_call.1} parent=1 // loop_pre_header
      _
    $region3: #{tpu_custom_call.1} parent=1 // loop_header
      %s22 = sphi 0, %s26
      %p23 = scmp.ge.s32.totalorder %s22, 4
      %s32 = sphi 0, %s34
      %s35 = sphi 0, %s32
      %s36 = sphi 0, %s35
      %s52 = sphi 0, %s36
      %s58 = sphi 0, %s60
      %s61 = sphi 0, %s58
      %s62 = sphi 0, %s61
      %s78 = sphi 0, %s62
      %s82 = sphi 0, %s82
      %s84 = sphi 0, %s82
      %s85 = sphi 0, %s84
      %s99 = sphi 0, %s85
      %s103 = sphi 0, %s103
      %s105 = sphi 0, %s103
      %s106 = sphi 0, %s105
      %s120 = sphi 0, %s106
      %s124 = sphi 0, %s124
      %s126 = sphi 0, %s124
      %s127 = sphi 0, %s126
      %s141 = sphi 0, %s127
      %s145 = sphi 0, %s145
      %s147 = sphi 0, %s145
      %s148 = sphi 0, %s147
      %s162 = sphi 0, %s148
      %s168 = sphi 0, %s170
      %s171 = sphi 0, %s168
      %s172 = sphi 0, %s171
      %s188 = sphi 0, %s172
    $region4: #{tpu_custom_call.1} parent=1 // loop_header_branch
      %25 = sbr.rel (%p23) target = $region8
    $region5: #{tpu_custom_call.1} parent=1 // loop_body
      %s27 = ssub.s32 %s22, 1
      %s28 = ssub.s32 %s22, 2
      %s29 = sadd.s32 %s22, 1
      %s30 = ssub.s32 %s22, %s29
      %p31 = scmp.eq.s32.totalorder %s30, 0
      %s33 = sadd.s32 %s32, 1
      %s34 = scalar_select %p31, %s32, %s33
      %p37 = pneg %p31
      %p38 = scmp.eq.s32.totalorder %s22, 1
      %p39 = por %p37, %p38
      %p40 = scmp.ne.s32.totalorder %s32, %s35
      %p41 = scmp.eq.s32.totalorder %s22, 0
      %p42 = por %p40, %p41
      %p43 = scmp.ne.s32.totalorder %s32, %s35
      %p44 = scmp.eq.s32.totalorder %s27, 1
      %p45 = por %p43, %p44
      %p46 = scmp.ne.s32.totalorder %s35, %s36
      %p47 = scmp.eq.s32.totalorder %s27, 0
      %p48 = por %p46, %p47
      %p49 = scmp.ne.s32.totalorder %s35, %s36
      %p50 = scmp.eq.s32.totalorder %s28, 1
      %p51 = por %p49, %p50
      %p53 = scmp.ne.s32.totalorder %s36, %s52
      %p54 = scmp.eq.s32.totalorder %s28, 0
      %p55 = por %p53, %p54
      %s56 = ssub.s32 %s22, %s29
      %p57 = scmp.eq.s32.totalorder %s56, 0
      %s59 = sadd.s32 %s58, 1
      %s60 = scalar_select %p57, %s58, %s59
      %p63 = pneg %p57
      %p64 = scmp.eq.s32.totalorder %s22, 1
      %p65 = por %p63, %p64
      %p66 = scmp.ne.s32.totalorder %s58, %s61
      %p67 = scmp.eq.s32.totalorder %s22, 0
      %p68 = por %p66, %p67
      %p69 = scmp.ne.s32.totalorder %s58, %s61
      %p70 = scmp.eq.s32.totalorder %s27, 1
      %p71 = por %p69, %p70
      %p72 = scmp.ne.s32.totalorder %s61, %s62
      %p73 = scmp.eq.s32.totalorder %s27, 0
      %p74 = por %p72, %p73
      %p75 = scmp.ne.s32.totalorder %s61, %s62
      %p76 = scmp.eq.s32.totalorder %s28, 1
      %p77 = por %p75, %p76
      %p79 = scmp.ne.s32.totalorder %s62, %s78
      %p80 = scmp.eq.s32.totalorder %s28, 0
      %p81 = por %p79, %p80
      %s83 = sadd.s32 %s82, 1
      %p86 = scmp.eq.s32.totalorder %s22, 1
      %p87 = scmp.ne.s32.totalorder %s82, %s84
      %p88 = scmp.eq.s32.totalorder %s22, 0
      %p89 = por %p87, %p88
      %p90 = scmp.ne.s32.totalorder %s82, %s84
      %p91 = scmp.eq.s32.totalorder %s27, 1
      %p92 = por %p90, %p91
      %p93 = scmp.ne.s32.totalorder %s84, %s85
      %p94 = scmp.eq.s32.totalorder %s27, 0
      %p95 = por %p93, %p94
      %p96 = scmp.ne.s32.totalorder %s84, %s85
      %p97 = scmp.eq.s32.totalorder %s28, 1
      %p98 = por %p96, %p97
      %p100 = scmp.ne.s32.totalorder %s85, %s99
      %p101 = scmp.eq.s32.totalorder %s28, 0
      %p102 = por %p100, %p101
      %s104 = sadd.s32 %s103, 1
      %p107 = scmp.eq.s32.totalorder %s22, 1
      %p108 = scmp.ne.s32.totalorder %s103, %s105
      %p109 = scmp.eq.s32.totalorder %s22, 0
      %p110 = por %p108, %p109
      %p111 = scmp.ne.s32.totalorder %s103, %s105
      %p112 = scmp.eq.s32.totalorder %s27, 1
      %p113 = por %p111, %p112
      %p114 = scmp.ne.s32.totalorder %s105, %s106
      %p115 = scmp.eq.s32.totalorder %s27, 0
      %p116 = por %p114, %p115
      %p117 = scmp.ne.s32.totalorder %s105, %s106
      %p118 = scmp.eq.s32.totalorder %s28, 1
      %p119 = por %p117, %p118
      %p121 = scmp.ne.s32.totalorder %s106, %s120
      %p122 = scmp.eq.s32.totalorder %s28, 0
      %p123 = por %p121, %p122
      %s125 = sadd.s32 %s124, 1
      %p128 = scmp.eq.s32.totalorder %s22, 1
      %p129 = scmp.ne.s32.totalorder %s124, %s126
      %p130 = scmp.eq.s32.totalorder %s22, 0
      %p131 = por %p129, %p130
      %p132 = scmp.ne.s32.totalorder %s124, %s126
      %p133 = scmp.eq.s32.totalorder %s27, 1
      %p134 = por %p132, %p133
      %p135 = scmp.ne.s32.totalorder %s126, %s127
      %p136 = scmp.eq.s32.totalorder %s27, 0
      %p137 = por %p135, %p136
      %p138 = scmp.ne.s32.totalorder %s126, %s127
      %p139 = scmp.eq.s32.totalorder %s28, 1
      %p140 = por %p138, %p139
      %p142 = scmp.ne.s32.totalorder %s127, %s141
      %p143 = scmp.eq.s32.totalorder %s28, 0
      %p144 = por %p142, %p143
      %s146 = sadd.s32 %s145, 1
      %p149 = scmp.eq.s32.totalorder %s22, 1
      %p150 = scmp.ne.s32.totalorder %s145, %s147
      %p151 = scmp.eq.s32.totalorder %s22, 0
      %p152 = por %p150, %p151
      %p153 = scmp.ne.s32.totalorder %s145, %s147
      %p154 = scmp.eq.s32.totalorder %s27, 1
      %p155 = por %p153, %p154
      %p156 = scmp.ne.s32.totalorder %s147, %s148
      %p157 = scmp.eq.s32.totalorder %s27, 0
      %p158 = por %p156, %p157
      %p159 = scmp.ne.s32.totalorder %s147, %s148
      %p160 = scmp.eq.s32.totalorder %s28, 1
      %p161 = por %p159, %p160
      %p163 = scmp.ne.s32.totalorder %s148, %s162
      %p164 = scmp.eq.s32.totalorder %s28, 0
      %p165 = por %p163, %p164
      %s166 = ssub.s32 %s22, %s29
      %p167 = scmp.eq.s32.totalorder %s166, 0
      %s169 = sadd.s32 %s168, 1
      %s170 = scalar_select %p167, %s168, %s169
      %p173 = pneg %p167
      %p174 = scmp.eq.s32.totalorder %s22, 1
      %p175 = por %p173, %p174
      %p176 = scmp.ne.s32.totalorder %s168, %s171
      %p177 = scmp.eq.s32.totalorder %s22, 0
      %p178 = por %p176, %p177
      %p179 = scmp.ne.s32.totalorder %s168, %s171
      %p180 = scmp.eq.s32.totalorder %s27, 1
      %p181 = por %p179, %p180
      %p182 = scmp.ne.s32.totalorder %s171, %s172
      %p183 = scmp.eq.s32.totalorder %s27, 0
      %p184 = por %p182, %p183
      %p185 = scmp.ne.s32.totalorder %s171, %s172
      %p186 = scmp.eq.s32.totalorder %s28, 1
      %p187 = por %p185, %p186
      %p189 = scmp.ne.s32.totalorder %s172, %s188
      %p190 = scmp.eq.s32.totalorder %s28, 0
      %p191 = por %p189, %p190
      %p192 = scmp.le.s32.totalorder 1, %s22
      %p193 = scmp.lt.s32.totalorder %s22, 3
      %p194 = pnand %p192, %p193
      %p195 = pneg %p194
      // Predicated region
      $region9: #{tpu_custom_call.1} parent=5 // pred_check
        _
      $region10: #{tpu_custom_call.1} parent=5 // pred_check_branch
        %197 = sbr.rel (%p194) target = $region12
      $region11: #{tpu_custom_call.1} parent=5 // pred_region
        %s198 = ssub.s32 %s22, 1
        // Predicated region
        $region13: #{tpu_custom_call.1} parent=11 // pred_check
          %p199 = pneg %p95
        $region14: #{tpu_custom_call.1} parent=11 // pred_check_branch
          %201 = sbr.rel (%p199) target = $region16
        $region15: #{tpu_custom_call.1} parent=11 // pred_region
          %203 = vsyncadd [#allocation6], 0
          %s204 = sshll.u32 %s2, 4
          %s205 = int_to_ptr.hbm [resolvable:$true] %s204
          %s206 = sshll.u32 [#allocation7], 4
          %s207 = int_to_ptr.vmem [resolvable:$true] %s206
          %212 = dma.hbm_to_vmem [thread:$0]  %s205, 16384, %s207, [#allocation6], 256, 256, 16
        $region16: #{tpu_custom_call.1} parent=11 // pred_fallthru
          _
        // Predicated region
        $region17: #{tpu_custom_call.1} parent=11 // pred_check
          %p213 = pneg %p116
        $region18: #{tpu_custom_call.1} parent=11 // pred_check_branch
          %215 = sbr.rel (%p213) target = $region20
        $region19: #{tpu_custom_call.1} parent=11 // pred_region
          _
        $region20: #{tpu_custom_call.1} parent=11 // pred_fallthru
          _
        // Predicated region
        $region21: #{tpu_custom_call.1} parent=11 // pred_check
          %p216 = pneg %p137
        $region22: #{tpu_custom_call.1} parent=11 // pred_check_branch
          %218 = sbr.rel (%p216) target = $region24
        $region23: #{tpu_custom_call.1} parent=11 // pred_region
          %220 = vsyncadd [#allocation9], 0
          %s221 = sshll.u32 %s4, 4
          %s222 = int_to_ptr.hbm [resolvable:$true] %s221
          %s223 = sshll.u32 [#allocation8], 4
          %s224 = int_to_ptr.vmem [resolvable:$true] %s223
          %229 = dma.hbm_to_vmem [thread:$0]  %s222, 4096, %s224, [#allocation9], 128, 128, 8
        $region24: #{tpu_custom_call.1} parent=11 // pred_fallthru
          _
        // Predicated region
        $region25: #{tpu_custom_call.1} parent=11 // pred_check
          %p230 = pneg %p158
        $region26: #{tpu_custom_call.1} parent=11 // pred_check_branch
          %232 = sbr.rel (%p230) target = $region28
        $region27: #{tpu_custom_call.1} parent=11 // pred_region
          _
        $region28: #{tpu_custom_call.1} parent=11 // pred_fallthru
          _
      $region12: #{tpu_custom_call.1} parent=5 // pred_fallthru
        _
      %p233 = scmp.lt.s32.totalorder %s22, 2
      // Predicated region
      $region29: #{tpu_custom_call.1} parent=5 // pred_check
        %p234 = pneg %p233
      $region30: #{tpu_custom_call.1} parent=5 // pred_check_branch
        %236 = sbr.rel (%p234) target = $region32
      $region31: #{tpu_custom_call.1} parent=5 // pred_region
        // Predicated region
        $region33: #{tpu_custom_call.1} parent=31 // pred_check
          %p237 = pneg %p42
        $region34: #{tpu_custom_call.1} parent=31 // pred_check_branch
          %239 = sbr.rel (%p237) target = $region36
        $region35: #{tpu_custom_call.1} parent=31 // pred_region
          %s240 = sand.u32 %s32, 1
          %s241 = scalar_lea.sflag [#allocation3], %s240
          %s242 = sand.u32 %s32, 1
          %s243 = smul.addr %s242, 16
          %s244 = scalar_lea.vmem [#allocation2], %s243
          %246 = vsyncadd %s241, 0
          %s247 = smul.addr %s22, 2
          %s248 = smul.addr %s247, 8
          %s249 = scalar_lea.hbm %s0, %s248
          %s251 = sshll.u32 %s249, 4
          %s252 = int_to_ptr.hbm [resolvable:$true] %s251
          %s253 = sshll.u32 %s244, 4
          %s254 = int_to_ptr.vmem [resolvable:$true] %s253
          %256 = dma.hbm_to_vmem [thread:$0]  %s252, 256, %s254, %s241
        $region36: #{tpu_custom_call.1} parent=31 // pred_fallthru
          _
        // Predicated region
        $region37: #{tpu_custom_call.1} parent=31 // pred_check
          %p257 = pneg %p68
        $region38: #{tpu_custom_call.1} parent=31 // pred_check_branch
          %259 = sbr.rel (%p257) target = $region40
        $region39: #{tpu_custom_call.1} parent=31 // pred_region
          %s260 = sand.u32 %s22, 1
          %s261 = scalar_lea.sflag [#allocation6], %s260
          %s262 = sand.u32 %s58, 1
          %s263 = smul.addr %s262, 16
          %s264 = scalar_lea.vmem [#allocation5], %s263
          %266 = vsyncadd %s261, 0
          %s267 = smul.addr %s22, 2
          %s268 = smul.addr %s267, 8
          %s269 = scalar_lea.hbm %s1, %s268
          %s271 = sshll.u32 %s269, 4
          %s272 = int_to_ptr.hbm [resolvable:$true] %s271
          %s273 = sshll.u32 %s264, 4
          %s274 = int_to_ptr.vmem [resolvable:$true] %s273
          %276 = dma.hbm_to_vmem [thread:$0]  %s272, 256, %s274, %s261
        $region40: #{tpu_custom_call.1} parent=31 // pred_fallthru
          _
      $region32: #{tpu_custom_call.1} parent=5 // pred_fallthru
        _
      %p277 = scmp.le.s32.totalorder 1, %s22
      %p278 = scmp.lt.s32.totalorder %s22, 3
      %p279 = pnand %p277, %p278
      %p280 = pneg %p279
      // Predicated region
      $region41: #{tpu_custom_call.1} parent=5 // pred_check
        _
      $region42: #{tpu_custom_call.1} parent=5 // pred_check_branch
        %282 = sbr.rel (%p279) target = $region44
      $region43: #{tpu_custom_call.1} parent=5 // pred_region
        %s283 = ssub.s32 %s22, 1
        %s284 = sand.u32 %s35, 1
        %s285 = scalar_lea.sflag [#allocation3], %s284
        %s286 = sand.u32 %s35, 1
        %s287 = smul.addr %s286, 16
        %s288 = scalar_lea.vmem [#allocation2], %s287
        // Predicated region
        $region45: #{tpu_custom_call.1} parent=43 // pred_check
          %p289 = pneg %p48
        $region46: #{tpu_custom_call.1} parent=43 // pred_check_branch
          %291 = sbr.rel (%p289) target = $region48
        $region47: #{tpu_custom_call.1} parent=43 // pred_region
          %293 = dma.done %s285, 256
        $region48: #{tpu_custom_call.1} parent=43 // pred_fallthru
          _
        %s294 = sand.u32 %s27, 1
        %s295 = scalar_lea.sflag [#allocation6], %s294
        %s296 = sand.u32 %s61, 1
        %s297 = smul.addr %s296, 16
        %s298 = scalar_lea.vmem [#allocation5], %s297
        // Predicated region
        $region49: #{tpu_custom_call.1} parent=43 // pred_check
          %p299 = pneg %p74
        $region50: #{tpu_custom_call.1} parent=43 // pred_check_branch
          %301 = sbr.rel (%p299) target = $region52
        $region51: #{tpu_custom_call.1} parent=43 // pred_region
          %303 = dma.done %s295, 256
        $region52: #{tpu_custom_call.1} parent=43 // pred_fallthru
          _
        // Predicated region
        $region53: #{tpu_custom_call.1} parent=43 // pred_check
          %p304 = pneg %p95
        $region54: #{tpu_custom_call.1} parent=43 // pred_check_branch
          %306 = sbr.rel (%p304) target = $region56
        $region55: #{tpu_custom_call.1} parent=43 // pred_region
          %308 = dma.done [#allocation6], 16384
        $region56: #{tpu_custom_call.1} parent=43 // pred_fallthru
          _
        // Predicated region
        $region57: #{tpu_custom_call.1} parent=43 // pred_check
          %p309 = pneg %p137
        $region58: #{tpu_custom_call.1} parent=43 // pred_check_branch
          %311 = sbr.rel (%p309) target = $region60
        $region59: #{tpu_custom_call.1} parent=43 // pred_region
          %313 = dma.done [#allocation9], 4096
        $region60: #{tpu_custom_call.1} parent=43 // pred_fallthru
          _
        %s314 = sand.u32 %s35, 1
        %s315 = scalar_lea.sflag [#allocation3], %s314
        %s316 = sand.u32 %s35, 1
        %s317 = smul.addr %s316, 16
        %s318 = scalar_lea.vmem [#allocation2], %s317
        %p319 = pneg %p48
        %p320 = pneg %p45
        %s321 = sand.u32 %s27, 1
        %s322 = scalar_lea.sflag [#allocation6], %s321
        %s323 = sand.u32 %s61, 1
        %s324 = smul.addr %s323, 16
        %s325 = scalar_lea.vmem [#allocation5], %s324
        %p326 = pneg %p74
        %p327 = pneg %p71
        %p328 = pneg %p95
        %p329 = pneg %p92
        %p330 = pneg %p116
        %p331 = pneg %p113
        %p332 = pneg %p137
        %p333 = pneg %p134
        %p334 = pneg %p158
        %p335 = pneg %p155
        %p336 = pneg %p184
        %p337 = pneg %p181
        %s338 = sand.u32 %s171, 1
        %s339 = scalar_lea.sflag [#allocation4], %s338
        %s340 = sand.u32 %s171, 1
        %s341 = smul.addr %s340, 8
        %s342 = scalar_lea.vmem [#allocation10], %s341
        %v343 = vld [vmem:[%s288] sm:$0xff]
        %v344 = vld [vmem:[%s288 + $0x8] sm:$0xff]
        %v345 = vld [vmem:[%s298] sm:$0xff]
        %v346 = vld [vmem:[%s298 + $0x8] sm:$0xff]
        %v347 = vld [vmem:[#allocation7] sm:$0xff]
        %v348 = vld [vmem:[#allocation7 + $0x8] sm:$0xff]
        %v349 = vld [vmem:[#allocation7 + $0x10] sm:$0xff]
        %v350 = vld [vmem:[#allocation7 + $0x18] sm:$0xff]
        %v351 = vld [vmem:[#allocation7 + $0x20] sm:$0xff]
        %v352 = vld [vmem:[#allocation7 + $0x28] sm:$0xff]
        %v353 = vld [vmem:[#allocation7 + $0x30] sm:$0xff]
        %v354 = vld [vmem:[#allocation7 + $0x38] sm:$0xff]
        %v355 = vld [vmem:[#allocation7 + $0x40] sm:$0xff]
        %v356 = vld [vmem:[#allocation7 + $0x48] sm:$0xff]
        %v357 = vld [vmem:[#allocation7 + $0x50] sm:$0xff]
        %v358 = vld [vmem:[#allocation7 + $0x58] sm:$0xff]
        %v359 = vld [vmem:[#allocation7 + $0x60] sm:$0xff]
        %v360 = vld [vmem:[#allocation7 + $0x68] sm:$0xff]
        %v361 = vld [vmem:[#allocation7 + $0x70] sm:$0xff]
        %v362 = vld [vmem:[#allocation7 + $0x78] sm:$0xff]
        %v363 = vld [vmem:[#allocation7 + $0x80] sm:$0xff]
        %v364 = vld [vmem:[#allocation7 + $0x88] sm:$0xff]
        %v365 = vld [vmem:[#allocation7 + $0x90] sm:$0xff]
        %v366 = vld [vmem:[#allocation7 + $0x98] sm:$0xff]
        %v367 = vld [vmem:[#allocation7 + $0xa0] sm:$0xff]
        %v368 = vld [vmem:[#allocation7 + $0xa8] sm:$0xff]
        %v369 = vld [vmem:[#allocation7 + $0xb0] sm:$0xff]
        %v370 = vld [vmem:[#allocation7 + $0xb8] sm:$0xff]
        %v371 = vld [vmem:[#allocation7 + $0xc0] sm:$0xff]
        %v372 = vld [vmem:[#allocation7 + $0xc8] sm:$0xff]
        %v373 = vld [vmem:[#allocation7 + $0xd0] sm:$0xff]
        %v374 = vld [vmem:[#allocation7 + $0xd8] sm:$0xff]
        %v375 = vld [vmem:[#allocation7 + $0xe0] sm:$0xff]
        %v376 = vld [vmem:[#allocation7 + $0xe8] sm:$0xff]
        %v377 = vld [vmem:[#allocation7 + $0xf0] sm:$0xff]
        %v378 = vld [vmem:[#allocation7 + $0xf8] sm:$0xff]
        %v379 = vld [vmem:[#allocation7 + $0x100] sm:$0xff]
        %v380 = vld [vmem:[#allocation7 + $0x108] sm:$0xff]
        %v381 = vld [vmem:[#allocation7 + $0x110] sm:$0xff]
        %v382 = vld [vmem:[#allocation7 + $0x118] sm:$0xff]
        %v383 = vld [vmem:[#allocation7 + $0x120] sm:$0xff]
        %v384 = vld [vmem:[#allocation7 + $0x128] sm:$0xff]
        %v385 = vld [vmem:[#allocation7 + $0x130] sm:$0xff]
        %v386 = vld [vmem:[#allocation7 + $0x138] sm:$0xff]
        %v387 = vld [vmem:[#allocation7 + $0x140] sm:$0xff]
        %v388 = vld [vmem:[#allocation7 + $0x148] sm:$0xff]
        %v389 = vld [vmem:[#allocation7 + $0x150] sm:$0xff]
        %v390 = vld [vmem:[#allocation7 + $0x158] sm:$0xff]
        %v391 = vld [vmem:[#allocation7 + $0x160] sm:$0xff]
        %v392 = vld [vmem:[#allocation7 + $0x168] sm:$0xff]
        %v393 = vld [vmem:[#allocation7 + $0x170] sm:$0xff]
        %v394 = vld [vmem:[#allocation7 + $0x178] sm:$0xff]
        %v395 = vld [vmem:[#allocation7 + $0x180] sm:$0xff]
        %v396 = vld [vmem:[#allocation7 + $0x188] sm:$0xff]
        %v397 = vld [vmem:[#allocation7 + $0x190] sm:$0xff]
        %v398 = vld [vmem:[#allocation7 + $0x198] sm:$0xff]
        %v399 = vld [vmem:[#allocation7 + $0x1a0] sm:$0xff]
        %v400 = vld [vmem:[#allocation7 + $0x1a8] sm:$0xff]
        %v401 = vld [vmem:[#allocation7 + $0x1b0] sm:$0xff]
        %v402 = vld [vmem:[#allocation7 + $0x1b8] sm:$0xff]
        %v403 = vld [vmem:[#allocation7 + $0x1c0] sm:$0xff]
        %v404 = vld [vmem:[#allocation7 + $0x1c8] sm:$0xff]
        %v405 = vld [vmem:[#allocation7 + $0x1d0] sm:$0xff]
        %v406 = vld [vmem:[#allocation7 + $0x1d8] sm:$0xff]
        %v407 = vld [vmem:[#allocation7 + $0x1e0] sm:$0xff]
        %v408 = vld [vmem:[#allocation7 + $0x1e8] sm:$0xff]
        %v409 = vld [vmem:[#allocation7 + $0x1f0] sm:$0xff]
        %v410 = vld [vmem:[#allocation7 + $0x1f8] sm:$0xff]
        %v411 = vld [vmem:[#allocation7 + $0x200] sm:$0xff]
        %v412 = vld [vmem:[#allocation7 + $0x208] sm:$0xff]
        %v413 = vld [vmem:[#allocation7 + $0x210] sm:$0xff]
        %v414 = vld [vmem:[#allocation7 + $0x218] sm:$0xff]
        %v415 = vld [vmem:[#allocation7 + $0x220] sm:$0xff]
        %v416 = vld [vmem:[#allocation7 + $0x228] sm:$0xff]
        %v417 = vld [vmem:[#allocation7 + $0x230] sm:$0xff]
        %v418 = vld [vmem:[#allocation7 + $0x238] sm:$0xff]
        %v419 = vld [vmem:[#allocation7 + $0x240] sm:$0xff]
        %v420 = vld [vmem:[#allocation7 + $0x248] sm:$0xff]
        %v421 = vld [vmem:[#allocation7 + $0x250] sm:$0xff]
        %v422 = vld [vmem:[#allocation7 + $0x258] sm:$0xff]
        %v423 = vld [vmem:[#allocation7 + $0x260] sm:$0xff]
        %v424 = vld [vmem:[#allocation7 + $0x268] sm:$0xff]
        %v425 = vld [vmem:[#allocation7 + $0x270] sm:$0xff]
        %v426 = vld [vmem:[#allocation7 + $0x278] sm:$0xff]
        %v427 = vld [vmem:[#allocation7 + $0x280] sm:$0xff]
        %v428 = vld [vmem:[#allocation7 + $0x288] sm:$0xff]
        %v429 = vld [vmem:[#allocation7 + $0x290] sm:$0xff]
        %v430 = vld [vmem:[#allocation7 + $0x298] sm:$0xff]
        %v431 = vld [vmem:[#allocation7 + $0x2a0] sm:$0xff]
        %v432 = vld [vmem:[#allocation7 + $0x2a8] sm:$0xff]
        %v433 = vld [vmem:[#allocation7 + $0x2b0] sm:$0xff]
        %v434 = vld [vmem:[#allocation7 + $0x2b8] sm:$0xff]
        %v435 = vld [vmem:[#allocation7 + $0x2c0] sm:$0xff]
        %v436 = vld [vmem:[#allocation7 + $0x2c8] sm:$0xff]
        %v437 = vld [vmem:[#allocation7 + $0x2d0] sm:$0xff]
        %v438 = vld [vmem:[#allocation7 + $0x2d8] sm:$0xff]
        %v439 = vld [vmem:[#allocation7 + $0x2e0] sm:$0xff]
        %v440 = vld [vmem:[#allocation7 + $0x2e8] sm:$0xff]
        %v441 = vld [vmem:[#allocation7 + $0x2f0] sm:$0xff]
        %v442 = vld [vmem:[#allocation7 + $0x2f8] sm:$0xff]
        %v443 = vld [vmem:[#allocation7 + $0x300] sm:$0xff]
        %v444 = vld [vmem:[#allocation7 + $0x308] sm:$0xff]
        %v445 = vld [vmem:[#allocation7 + $0x310] sm:$0xff]
        %v446 = vld [vmem:[#allocation7 + $0x318] sm:$0xff]
        %v447 = vld [vmem:[#allocation7 + $0x320] sm:$0xff]
        %v448 = vld [vmem:[#allocation7 + $0x328] sm:$0xff]
        %v449 = vld [vmem:[#allocation7 + $0x330] sm:$0xff]
        %v450 = vld [vmem:[#allocation7 + $0x338] sm:$0xff]
        %v451 = vld [vmem:[#allocation7 + $0x340] sm:$0xff]
        %v452 = vld [vmem:[#allocation7 + $0x348] sm:$0xff]
        %v453 = vld [vmem:[#allocation7 + $0x350] sm:$0xff]
        %v454 = vld [vmem:[#allocation7 + $0x358] sm:$0xff]
        %v455 = vld [vmem:[#allocation7 + $0x360] sm:$0xff]
        %v456 = vld [vmem:[#allocation7 + $0x368] sm:$0xff]
        %v457 = vld [vmem:[#allocation7 + $0x370] sm:$0xff]
        %v458 = vld [vmem:[#allocation7 + $0x378] sm:$0xff]
        %v459 = vld [vmem:[#allocation7 + $0x380] sm:$0xff]
        %v460 = vld [vmem:[#allocation7 + $0x388] sm:$0xff]
        %v461 = vld [vmem:[#allocation7 + $0x390] sm:$0xff]
        %v462 = vld [vmem:[#allocation7 + $0x398] sm:$0xff]
        %v463 = vld [vmem:[#allocation7 + $0x3a0] sm:$0xff]
        %v464 = vld [vmem:[#allocation7 + $0x3a8] sm:$0xff]
        %v465 = vld [vmem:[#allocation7 + $0x3b0] sm:$0xff]
        %v466 = vld [vmem:[#allocation7 + $0x3b8] sm:$0xff]
        %v467 = vld [vmem:[#allocation7 + $0x3c0] sm:$0xff]
        %v468 = vld [vmem:[#allocation7 + $0x3c8] sm:$0xff]
        %v469 = vld [vmem:[#allocation7 + $0x3d0] sm:$0xff]
        %v470 = vld [vmem:[#allocation7 + $0x3d8] sm:$0xff]
        %v471 = vld [vmem:[#allocation7 + $0x3e0] sm:$0xff]
        %v472 = vld [vmem:[#allocation7 + $0x3e8] sm:$0xff]
        %v473 = vld [vmem:[#allocation7 + $0x3f0] sm:$0xff]
        %v474 = vld [vmem:[#allocation7 + $0x3f8] sm:$0xff]
        %475 = vmatpush.msra.mxu0 %v441
        %476 = vmatpush.msra.mxu0 %v439
        %477 = vmatpush.msra.mxu0 %v437
        %478 = vmatpush.msra.mxu0 %v435
        %479 = vmatpush.msra.mxu0 %v433
        %480 = vmatpush.msra.mxu0 %v431
        %481 = vmatpush.msra.mxu0 %v429
        %482 = vmatpush.msra.mxu0 %v427
        %483 = vmatpush.msra.mxu0 %v425
        %484 = vmatpush.msra.mxu0 %v423
        %485 = vmatpush.msra.mxu0 %v421
        %486 = vmatpush.msra.mxu0 %v419
        %487 = vmatpush.msra.mxu0 %v417
        %488 = vmatpush.msra.mxu0 %v415
        %489 = vmatpush.msra.mxu0 %v413
        %490 = vmatpush.msra.mxu0 %v411
        %491 = vmatmul.f32.gmra.mxu0 %v345
        %v492 = vpop.f32.mrf.mxu0
        %v493 = vadd.f32 0.0, %v492
        %494 = vdwg.mxu0
        %495 = vmatpush.msra.mxu0 %v473
        %496 = vmatpush.msra.mxu0 %v471
        %497 = vmatpush.msra.mxu0 %v469
        %498 = vmatpush.msra.mxu0 %v467
        %499 = vmatpush.msra.mxu0 %v465
        %500 = vmatpush.msra.mxu0 %v463
        %501 = vmatpush.msra.mxu0 %v461
        %502 = vmatpush.msra.mxu0 %v459
        %503 = vmatpush.msra.mxu0 %v457
        %504 = vmatpush.msra.mxu0 %v455
        %505 = vmatpush.msra.mxu0 %v453
        %506 = vmatpush.msra.mxu0 %v451
        %507 = vmatpush.msra.mxu0 %v449
        %508 = vmatpush.msra.mxu0 %v447
        %509 = vmatpush.msra.mxu0 %v445
        %510 = vmatpush.msra.mxu0 %v443
        %511 = vmatmul.f32.gmra.mxu0 %v346
        %v512 = vpop.f32.mrf.mxu0
        %v513 = vadd.f32 %v493, %v512
        %514 = vdwg.mxu0
        %515 = vmatpush.msra.mxu0 %v442
        %516 = vmatpush.msra.mxu0 %v440
        %517 = vmatpush.msra.mxu0 %v438
        %518 = vmatpush.msra.mxu0 %v436
        %519 = vmatpush.msra.mxu0 %v434
        %520 = vmatpush.msra.mxu0 %v432
        %521 = vmatpush.msra.mxu0 %v430
        %522 = vmatpush.msra.mxu0 %v428
        %523 = vmatpush.msra.mxu0 %v426
        %524 = vmatpush.msra.mxu0 %v424
        %525 = vmatpush.msra.mxu0 %v422
        %526 = vmatpush.msra.mxu0 %v420
        %527 = vmatpush.msra.mxu0 %v418
        %528 = vmatpush.msra.mxu0 %v416
        %529 = vmatpush.msra.mxu0 %v414
        %530 = vmatpush.msra.mxu0 %v412
        %531 = vmatmul.f32.gmra.mxu0 %v345
        %v532 = vpop.f32.mrf.mxu0
        %v533 = vadd.f32 0.0, %v532
        %534 = vdwg.mxu0
        %535 = vmatpush.msra.mxu0 %v474
        %536 = vmatpush.msra.mxu0 %v472
        %537 = vmatpush.msra.mxu0 %v470
        %538 = vmatpush.msra.mxu0 %v468
        %539 = vmatpush.msra.mxu0 %v466
        %540 = vmatpush.msra.mxu0 %v464
        %541 = vmatpush.msra.mxu0 %v462
        %542 = vmatpush.msra.mxu0 %v460
        %543 = vmatpush.msra.mxu0 %v458
        %544 = vmatpush.msra.mxu0 %v456
        %545 = vmatpush.msra.mxu0 %v454
        %546 = vmatpush.msra.mxu0 %v452
        %547 = vmatpush.msra.mxu0 %v450
        %548 = vmatpush.msra.mxu0 %v448
        %549 = vmatpush.msra.mxu0 %v446
        %550 = vmatpush.msra.mxu0 %v444
        %551 = vmatmul.f32.gmra.mxu0 %v346
        %v552 = vpop.f32.mrf.mxu0
        %v553 = vadd.f32 %v533, %v552
        %554 = vdwg.mxu0
        %555 = vmatpush.msra.mxu0 %v377
        %556 = vmatpush.msra.mxu0 %v375
        %557 = vmatpush.msra.mxu0 %v373
        %558 = vmatpush.msra.mxu0 %v371
        %559 = vmatpush.msra.mxu0 %v369
        %560 = vmatpush.msra.mxu0 %v367
        %561 = vmatpush.msra.mxu0 %v365
        %562 = vmatpush.msra.mxu0 %v363
        %563 = vmatpush.msra.mxu0 %v361
        %564 = vmatpush.msra.mxu0 %v359
        %565 = vmatpush.msra.mxu0 %v357
        %566 = vmatpush.msra.mxu0 %v355
        %567 = vmatpush.msra.mxu0 %v353
        %568 = vmatpush.msra.mxu0 %v351
        %569 = vmatpush.msra.mxu0 %v349
        %570 = vmatpush.msra.mxu0 %v347
        %571 = vmatmul.f32.gmra.mxu0 %v343
        %v572 = vpop.f32.mrf.mxu0
        %v573 = vadd.f32 %v513, %v572
        %574 = vdwg.mxu0
        %575 = vmatpush.msra.mxu0 %v409
        %576 = vmatpush.msra.mxu0 %v407
        %577 = vmatpush.msra.mxu0 %v405
        %578 = vmatpush.msra.mxu0 %v403
        %579 = vmatpush.msra.mxu0 %v401
        %580 = vmatpush.msra.mxu0 %v399
        %581 = vmatpush.msra.mxu0 %v397
        %582 = vmatpush.msra.mxu0 %v395
        %583 = vmatpush.msra.mxu0 %v393
        %584 = vmatpush.msra.mxu0 %v391
        %585 = vmatpush.msra.mxu0 %v389
        %586 = vmatpush.msra.mxu0 %v387
        %587 = vmatpush.msra.mxu0 %v385
        %588 = vmatpush.msra.mxu0 %v383
        %589 = vmatpush.msra.mxu0 %v381
        %590 = vmatpush.msra.mxu0 %v379
        %591 = vmatmul.f32.gmra.mxu0 %v344
        %v592 = vpop.f32.mrf.mxu0
        %v593 = vadd.f32 %v573, %v592
        %594 = vdwg.mxu0
        %595 = vmatpush.msra.mxu0 %v378
        %596 = vmatpush.msra.mxu0 %v376
        %597 = vmatpush.msra.mxu0 %v374
        %598 = vmatpush.msra.mxu0 %v372
        %599 = vmatpush.msra.mxu0 %v370
        %600 = vmatpush.msra.mxu0 %v368
        %601 = vmatpush.msra.mxu0 %v366
        %602 = vmatpush.msra.mxu0 %v364
        %603 = vmatpush.msra.mxu0 %v362
        %604 = vmatpush.msra.mxu0 %v360
        %605 = vmatpush.msra.mxu0 %v358
        %606 = vmatpush.msra.mxu0 %v356
        %607 = vmatpush.msra.mxu0 %v354
        %608 = vmatpush.msra.mxu0 %v352
        %609 = vmatpush.msra.mxu0 %v350
        %610 = vmatpush.msra.mxu0 %v348
        %611 = vmatmul.f32.gmra.mxu0 %v343
        %v612 = vpop.f32.mrf.mxu0
        %v613 = vadd.f32 %v553, %v612
        %614 = vdwg.mxu0
        %615 = vmatpush.msra.mxu0 %v410
        %616 = vmatpush.msra.mxu0 %v408
        %617 = vmatpush.msra.mxu0 %v406
        %618 = vmatpush.msra.mxu0 %v404
        %619 = vmatpush.msra.mxu0 %v402
        %620 = vmatpush.msra.mxu0 %v400
        %621 = vmatpush.msra.mxu0 %v398
        %622 = vmatpush.msra.mxu0 %v396
        %623 = vmatpush.msra.mxu0 %v394
        %624 = vmatpush.msra.mxu0 %v392
        %625 = vmatpush.msra.mxu0 %v390
        %626 = vmatpush.msra.mxu0 %v388
        %627 = vmatpush.msra.mxu0 %v386
        %628 = vmatpush.msra.mxu0 %v384
        %629 = vmatpush.msra.mxu0 %v382
        %630 = vmatpush.msra.mxu0 %v380
        %631 = vmatmul.f32.gmra.mxu0 %v344
        %v632 = vpop.f32.mrf.mxu0
        %v633 = vadd.f32 %v613, %v632
        %634 = vdwg.mxu0
        %v635 = vld [vmem:[%s3] sm:$0x3]
        %v637 = vperm.slane %v635, 0
        %v638 = vperm.slane %v635, 1
        %v641 = vadd.f32 %v593, %v637
        %v642 = vadd.f32 %v633, %v638
        %v643 = vmax.f32 %v641, 0.0
        %v644 = vmax.f32 %v642, 0.0
        %v645 = vld [vmem:[#allocation8] sm:$0xff]
        %v646 = vld [vmem:[#allocation8 + $0x8] sm:$0xff]
        %v647 = vld [vmem:[#allocation8 + $0x10] sm:$0xff]
        %v648 = vld [vmem:[#allocation8 + $0x18] sm:$0xff]
        %v649 = vld [vmem:[#allocation8 + $0x20] sm:$0xff]
        %v650 = vld [vmem:[#allocation8 + $0x28] sm:$0xff]
        %v651 = vld [vmem:[#allocation8 + $0x30] sm:$0xff]
        %v652 = vld [vmem:[#allocation8 + $0x38] sm:$0xff]
        %v653 = vld [vmem:[#allocation8 + $0x40] sm:$0xff]
        %v654 = vld [vmem:[#allocation8 + $0x48] sm:$0xff]
        %v655 = vld [vmem:[#allocation8 + $0x50] sm:$0xff]
        %v656 = vld [vmem:[#allocation8 + $0x58] sm:$0xff]
        %v657 = vld [vmem:[#allocation8 + $0x60] sm:$0xff]
        %v658 = vld [vmem:[#allocation8 + $0x68] sm:$0xff]
        %v659 = vld [vmem:[#allocation8 + $0x70] sm:$0xff]
        %v660 = vld [vmem:[#allocation8 + $0x78] sm:$0xff]
        %v661 = vld [vmem:[#allocation8 + $0x80] sm:$0xff]
        %v662 = vld [vmem:[#allocation8 + $0x88] sm:$0xff]
        %v663 = vld [vmem:[#allocation8 + $0x90] sm:$0xff]
        %v664 = vld [vmem:[#allocation8 + $0x98] sm:$0xff]
        %v665 = vld [vmem:[#allocation8 + $0xa0] sm:$0xff]
        %v666 = vld [vmem:[#allocation8 + $0xa8] sm:$0xff]
        %v667 = vld [vmem:[#allocation8 + $0xb0] sm:$0xff]
        %v668 = vld [vmem:[#allocation8 + $0xb8] sm:$0xff]
        %v669 = vld [vmem:[#allocation8 + $0xc0] sm:$0xff]
        %v670 = vld [vmem:[#allocation8 + $0xc8] sm:$0xff]
        %v671 = vld [vmem:[#allocation8 + $0xd0] sm:$0xff]
        %v672 = vld [vmem:[#allocation8 + $0xd8] sm:$0xff]
        %v673 = vld [vmem:[#allocation8 + $0xe0] sm:$0xff]
        %v674 = vld [vmem:[#allocation8 + $0xe8] sm:$0xff]
        %v675 = vld [vmem:[#allocation8 + $0xf0] sm:$0xff]
        %v676 = vld [vmem:[#allocation8 + $0xf8] sm:$0xff]
        %v677 = vld [vmem:[%s5] sm:$0x1]
        %v679 = vperm.slane %v677, 0
        %681 = vmatpush.msra.mxu0 %v660
        %682 = vmatpush.msra.mxu0 %v659
        %683 = vmatpush.msra.mxu0 %v658
        %684 = vmatpush.msra.mxu0 %v657
        %685 = vmatpush.msra.mxu0 %v656
        %686 = vmatpush.msra.mxu0 %v655
        %687 = vmatpush.msra.mxu0 %v654
        %688 = vmatpush.msra.mxu0 %v653
        %689 = vmatpush.msra.mxu0 %v652
        %690 = vmatpush.msra.mxu0 %v651
        %691 = vmatpush.msra.mxu0 %v650
        %692 = vmatpush.msra.mxu0 %v649
        %693 = vmatpush.msra.mxu0 %v648
        %694 = vmatpush.msra.mxu0 %v647
        %695 = vmatpush.msra.mxu0 %v646
        %696 = vmatpush.msra.mxu0 %v645
        %697 = vmatmul.f32.gmra.mxu0 %v643
        %v698 = vpop.f32.mrf.mxu0
        %v699 = vadd.f32 %v679, %v698
        %700 = vdwg.mxu0
        %701 = vmatpush.msra.mxu0 %v676
        %702 = vmatpush.msra.mxu0 %v675
        %703 = vmatpush.msra.mxu0 %v674
        %704 = vmatpush.msra.mxu0 %v673
        %705 = vmatpush.msra.mxu0 %v672
        %706 = vmatpush.msra.mxu0 %v671
        %707 = vmatpush.msra.mxu0 %v670
        %708 = vmatpush.msra.mxu0 %v669
        %709 = vmatpush.msra.mxu0 %v668
        %710 = vmatpush.msra.mxu0 %v667
        %711 = vmatpush.msra.mxu0 %v666
        %712 = vmatpush.msra.mxu0 %v665
        %713 = vmatpush.msra.mxu0 %v664
        %714 = vmatpush.msra.mxu0 %v663
        %715 = vmatpush.msra.mxu0 %v662
        %716 = vmatpush.msra.mxu0 %v661
        %717 = vmatmul.f32.gmra.mxu0 %v644
        %v718 = vpop.f32.mrf.mxu0
        %v719 = vadd.f32 %v699, %v718
        %720 = vdwg.mxu0
        %721 = vst [vmem:[%s342] sm:$0xff] %v719
        %s722 = sand.u32 %s171, 1
        %s723 = scalar_lea.sflag [#allocation4], %s722
        %s724 = sand.u32 %s171, 1
        %s725 = smul.addr %s724, 8
        %s726 = scalar_lea.vmem [#allocation10], %s725
        // Predicated region
        $region61: #{tpu_custom_call.1} parent=43 // pred_check
          %p727 = pneg %p181
        $region62: #{tpu_custom_call.1} parent=43 // pred_check_branch
          %729 = sbr.rel (%p727) target = $region64
        $region63: #{tpu_custom_call.1} parent=43 // pred_region
          %731 = vsyncadd %s723, 0
          %s732 = smul.addr %s27, 8
          %s733 = scalar_lea.hbm %s6, %s732
          %s735 = sshll.u32 %s726, 4
          %s736 = int_to_ptr.vmem [resolvable:$true] %s735
          %s737 = sshll.u32 %s733, 4
          %s738 = int_to_ptr.hbm [resolvable:$true] %s737
          %740 = dma.vmem_to_hbm [thread:$0]  %s736, 128, %s738, %s723
        $region64: #{tpu_custom_call.1} parent=43 // pred_fallthru
          _
      $region44: #{tpu_custom_call.1} parent=5 // pred_fallthru
        _
      %p741 = scmp.le.s32.totalorder 2, %s22
      // Predicated region
      $region65: #{tpu_custom_call.1} parent=5 // pred_check
        %p742 = pneg %p741
      $region66: #{tpu_custom_call.1} parent=5 // pred_check_branch
        %744 = sbr.rel (%p742) target = $region68
      $region67: #{tpu_custom_call.1} parent=5 // pred_region
        %s745 = ssub.s32 %s22, 2
        // Predicated region
        $region69: #{tpu_custom_call.1} parent=67 // pred_check
          %p746 = pneg %p187
        $region70: #{tpu_custom_call.1} parent=67 // pred_check_branch
          %748 = sbr.rel (%p746) target = $region72
        $region71: #{tpu_custom_call.1} parent=67 // pred_region
          %s749 = sand.u32 %s172, 1
          %s750 = scalar_lea.sflag [#allocation4], %s749
          %s751 = sand.u32 %s172, 1
          %s752 = smul.addr %s751, 8
          %s753 = scalar_lea.vmem [#allocation10], %s752
          %755 = dma.done %s750, 128
        $region72: #{tpu_custom_call.1} parent=67 // pred_fallthru
          _
      $region68: #{tpu_custom_call.1} parent=5 // pred_fallthru
        _
    $region6: #{tpu_custom_call.1} parent=1 // loop_footer
      %s26 = sadd.s32 1, %s22
    $region7: #{tpu_custom_call.1} parent=1 // loop_footer_branch
      %21 = sbr.rel target = $region3
    $region8: #{tpu_custom_call.1} parent=1 // loop_exit
      _
    %756 = vsyncpa [#allocation3], 1
    %s757 = scalar_lea.sflag [#allocation3], 1
    %758 = vsyncpa %s757, 1
    %759 = vsyncpa [#allocation6], 1
    %s760 = scalar_lea.sflag [#allocation6], 1
    %761 = vsyncpa %s760, 1
    %762 = vsyncpa [#allocation9], 1
    %763 = vsyncpa [#allocation4], 1
    %s764 = scalar_lea.sflag [#allocation4], 1
    %765 = vsyncpa %s764, 1

// kernel: tpu_custom_call.1
$region0: #{tpu_custom_call.1}
  #allocation0 [shape = 'u32[]', space=smem, size = 0x4, offset = 0x4, fixed_abs, tag = 'smem constant byte address 0x4 - core index']
  #allocation1 [shape = 'u32[72,128]{1,0:T(1,128)}', space=vmem, size = 0x9000, scoped, tag = 'internal scratch']
  %s0 = inlined_call_operand.hbm [shape: f32[16,256], index: 0, kind: input, shape index: {}]
  %s1 = inlined_call_operand.hbm [shape: f32[16,256], index: 1, kind: input, shape index: {}]
  %s2 = inlined_call_operand.hbm [shape: f32[512,256], index: 2, kind: input, shape index: {}]
  %s3 = inlined_call_operand.vmem [shape: f32[1,256], index: 3, kind: input, shape index: {}]
  %s4 = inlined_call_operand.hbm [shape: f32[256,128], index: 4, kind: input, shape index: {}]
  %s5 = inlined_call_operand.vmem [shape: f32[1,128], index: 5, kind: input, shape index: {}]
  %s6 = inlined_call_operand.hbm [shape: f32[16,128], index: 6, kind: output, shape index: {}]
  %s7 = sld [smem:[#allocation0]]
  $region73: #{tpu_custom_call.1} parent=0
    _
  %s9 = ssub.s32 1, %s7
  %s10 = scalar_select 0, %s9, %s7
  $region1: #{tpu_custom_call.1} parent=0
    #allocation2 [shape = 'u8[16384]{0}', space=vmem, size = 0x4000, scoped, tag = 'input window, operand 0']
    #allocation3 [shape = 's32[2]{0}', space=sflag, size = 0x8, scoped, tag = 'scoped memory for tpu_custom_call.1']
    #allocation4 [shape = 's32[2]{0}', space=sflag, size = 0x8, scoped, tag = 'scoped memory for tpu_custom_call.1']
    #allocation5 [shape = 'u8[16384]{0}', space=vmem, size = 0x4000, scoped, tag = 'input window, operand 1']
    #allocation6 [shape = 's32[2]{0}', space=sflag, size = 0x8, scoped, tag = 'scoped memory for tpu_custom_call.1']
    #allocation7 [shape = 'u8[524288]{0}', space=vmem, size = 0x80000, scoped, tag = 'input window, operand 2, single buffered']
    #allocation8 [shape = 'u8[131072]{0}', space=vmem, size = 0x20000, scoped, tag = 'input window, operand 4, single buffered']
    #allocation9 [shape = 's32[1]{0}', space=sflag, size = 0x4, scoped, tag = 'scoped memory for tpu_custom_call.1']
    #allocation10 [shape = 'u8[8192]{0}', space=vmem, size = 0x2000, scoped, tag = 'output window, operand 0']
    %11 = vsyncpa [#allocation3], 0
    %s12 = scalar_lea.sflag [#allocation3], 1
    %13 = vsyncpa %s12, 0
    %14 = vsyncpa [#allocation6], 0
    %s15 = scalar_lea.sflag [#allocation6], 1
    %16 = vsyncpa %s15, 0
    %17 = vsyncpa [#allocation9], 0
    %18 = vsyncpa [#allocation4], 0
    %s19 = scalar_lea.sflag [#allocation4], 1
    %20 = vsyncpa %s19, 0
    loop: start=0, step=1, limit=4
    $region2: #{tpu_custom_call.1} parent=1 // loop_pre_header
      _
    $region3: #{tpu_custom_call.1} parent=1 // loop_header
      %s22 = sphi 0, %s26
      %p23 = scmp.ge.s32.totalorder %s22, 4
      %s32 = sphi 0, %s34
      %s35 = sphi 0, %s32
      %s36 = sphi 0, %s35
      %s52 = sphi 0, %s36
      %s58 = sphi 0, %s60
      %s61 = sphi 0, %s58
      %s62 = sphi 0, %s61
      %s78 = sphi 0, %s62
      %s82 = sphi 0, %s82
      %s84 = sphi 0, %s82
      %s85 = sphi 0, %s84
      %s99 = sphi 0, %s85
      %s103 = sphi 0, %s103
      %s105 = sphi 0, %s103
      %s106 = sphi 0, %s105
      %s120 = sphi 0, %s106
      %s124 = sphi 0, %s124
      %s126 = sphi 0, %s124
      %s127 = sphi 0, %s126
      %s141 = sphi 0, %s127
      %s145 = sphi 0, %s145
      %s147 = sphi 0, %s145
      %s148 = sphi 0, %s147
      %s162 = sphi 0, %s148
      %s168 = sphi 0, %s170
      %s171 = sphi 0, %s168
      %s172 = sphi 0, %s171
      %s188 = sphi 0, %s172
    $region4: #{tpu_custom_call.1} parent=1 // loop_header_branch
      %25 = sbr.rel (%p23) target = $region8
    $region5: #{tpu_custom_call.1} parent=1 // loop_body
      %s27 = ssub.s32 %s22, 1
      %s28 = ssub.s32 %s22, 2
      %s29 = sadd.s32 %s22, 1
      %s30 = ssub.s32 %s22, %s29
      %p31 = scmp.eq.s32.totalorder %s30, 0
      %s33 = sadd.s32 %s32, 1
      %s34 = scalar_select %p31, %s32, %s33
      %p37 = pneg %p31
      %p38 = scmp.eq.s32.totalorder %s22, 1
      %p39 = por %p37, %p38
      %p40 = scmp.ne.s32.totalorder %s32, %s35
      %p41 = scmp.eq.s32.totalorder %s22, 0
      %p42 = por %p40, %p41
      %p43 = scmp.ne.s32.totalorder %s32, %s35
      %p44 = scmp.eq.s32.totalorder %s27, 1
      %p45 = por %p43, %p44
      %p46 = scmp.ne.s32.totalorder %s35, %s36
      %p47 = scmp.eq.s32.totalorder %s27, 0
      %p48 = por %p46, %p47
      %p49 = scmp.ne.s32.totalorder %s35, %s36
      %p50 = scmp.eq.s32.totalorder %s28, 1
      %p51 = por %p49, %p50
      %p53 = scmp.ne.s32.totalorder %s36, %s52
      %p54 = scmp.eq.s32.totalorder %s28, 0
      %p55 = por %p53, %p54
      %s56 = ssub.s32 %s22, %s29
      %p57 = scmp.eq.s32.totalorder %s56, 0
      %s59 = sadd.s32 %s58, 1
      %s60 = scalar_select %p57, %s58, %s59
      %p63 = pneg %p57
      %p64 = scmp.eq.s32.totalorder %s22, 1
      %p65 = por %p63, %p64
      %p66 = scmp.ne.s32.totalorder %s58, %s61
      %p67 = scmp.eq.s32.totalorder %s22, 0
      %p68 = por %p66, %p67
      %p69 = scmp.ne.s32.totalorder %s58, %s61
      %p70 = scmp.eq.s32.totalorder %s27, 1
      %p71 = por %p69, %p70
      %p72 = scmp.ne.s32.totalorder %s61, %s62
      %p73 = scmp.eq.s32.totalorder %s27, 0
      %p74 = por %p72, %p73
      %p75 = scmp.ne.s32.totalorder %s61, %s62
      %p76 = scmp.eq.s32.totalorder %s28, 1
      %p77 = por %p75, %p76
      %p79 = scmp.ne.s32.totalorder %s62, %s78
      %p80 = scmp.eq.s32.totalorder %s28, 0
      %p81 = por %p79, %p80
      %s83 = sadd.s32 %s82, 1
      %p86 = scmp.eq.s32.totalorder %s22, 1
      %p87 = scmp.ne.s32.totalorder %s82, %s84
      %p88 = scmp.eq.s32.totalorder %s22, 0
      %p89 = por %p87, %p88
      %p90 = scmp.ne.s32.totalorder %s82, %s84
      %p91 = scmp.eq.s32.totalorder %s27, 1
      %p92 = por %p90, %p91
      %p93 = scmp.ne.s32.totalorder %s84, %s85
      %p94 = scmp.eq.s32.totalorder %s27, 0
      %p95 = por %p93, %p94
      %p96 = scmp.ne.s32.totalorder %s84, %s85
      %p97 = scmp.eq.s32.totalorder %s28, 1
      %p98 = por %p96, %p97
      %p100 = scmp.ne.s32.totalorder %s85, %s99
      %p101 = scmp.eq.s32.totalorder %s28, 0
      %p102 = por %p100, %p101
      %s104 = sadd.s32 %s103, 1
      %p107 = scmp.eq.s32.totalorder %s22, 1
      %p108 = scmp.ne.s32.totalorder %s103, %s105
      %p109 = scmp.eq.s32.totalorder %s22, 0
      %p110 = por %p108, %p109
      %p111 = scmp.ne.s32.totalorder %s103, %s105
      %p112 = scmp.eq.s32.totalorder %s27, 1
      %p113 = por %p111, %p112
      %p114 = scmp.ne.s32.totalorder %s105, %s106
      %p115 = scmp.eq.s32.totalorder %s27, 0
      %p116 = por %p114, %p115
      %p117 = scmp.ne.s32.totalorder %s105, %s106
      %p118 = scmp.eq.s32.totalorder %s28, 1
      %p119 = por %p117, %p118
      %p121 = scmp.ne.s32.totalorder %s106, %s120
      %p122 = scmp.eq.s32.totalorder %s28, 0
      %p123 = por %p121, %p122
      %s125 = sadd.s32 %s124, 1
      %p128 = scmp.eq.s32.totalorder %s22, 1
      %p129 = scmp.ne.s32.totalorder %s124, %s126
      %p130 = scmp.eq.s32.totalorder %s22, 0
      %p131 = por %p129, %p130
      %p132 = scmp.ne.s32.totalorder %s124, %s126
      %p133 = scmp.eq.s32.totalorder %s27, 1
      %p134 = por %p132, %p133
      %p135 = scmp.ne.s32.totalorder %s126, %s127
      %p136 = scmp.eq.s32.totalorder %s27, 0
      %p137 = por %p135, %p136
      %p138 = scmp.ne.s32.totalorder %s126, %s127
      %p139 = scmp.eq.s32.totalorder %s28, 1
      %p140 = por %p138, %p139
      %p142 = scmp.ne.s32.totalorder %s127, %s141
      %p143 = scmp.eq.s32.totalorder %s28, 0
      %p144 = por %p142, %p143
      %s146 = sadd.s32 %s145, 1
      %p149 = scmp.eq.s32.totalorder %s22, 1
      %p150 = scmp.ne.s32.totalorder %s145, %s147
      %p151 = scmp.eq.s32.totalorder %s22, 0
      %p152 = por %p150, %p151
      %p153 = scmp.ne.s32.totalorder %s145, %s147
      %p154 = scmp.eq.s32.totalorder %s27, 1
      %p155 = por %p153, %p154
      %p156 = scmp.ne.s32.totalorder %s147, %s148
      %p157 = scmp.eq.s32.totalorder %s27, 0
      %p158 = por %p156, %p157
      %p159 = scmp.ne.s32.totalorder %s147, %s148
      %p160 = scmp.eq.s32.totalorder %s28, 1
      %p161 = por %p159, %p160
      %p163 = scmp.ne.s32.totalorder %s148, %s162
      %p164 = scmp.eq.s32.totalorder %s28, 0
      %p165 = por %p163, %p164
      %s166 = ssub.s32 %s22, %s29
      %p167 = scmp.eq.s32.totalorder %s166, 0
      %s169 = sadd.s32 %s168, 1
      %s170 = scalar_select %p167, %s168, %s169
      %p173 = pneg %p167
      %p174 = scmp.eq.s32.totalorder %s22, 1
      %p175 = por %p173, %p174
      %p176 = scmp.ne.s32.totalorder %s168, %s171
      %p177 = scmp.eq.s32.totalorder %s22, 0
      %p178 = por %p176, %p177
      %p179 = scmp.ne.s32.totalorder %s168, %s171
      %p180 = scmp.eq.s32.totalorder %s27, 1
      %p181 = por %p179, %p180
      %p182 = scmp.ne.s32.totalorder %s171, %s172
      %p183 = scmp.eq.s32.totalorder %s27, 0
      %p184 = por %p182, %p183
      %p185 = scmp.ne.s32.totalorder %s171, %s172
      %p186 = scmp.eq.s32.totalorder %s28, 1
      %p187 = por %p185, %p186
      %p189 = scmp.ne.s32.totalorder %s172, %s188
      %p190 = scmp.eq.s32.totalorder %s28, 0
      %p191 = por %p189, %p190
      %p192 = scmp.le.s32.totalorder 1, %s22
      %p193 = scmp.lt.s32.totalorder %s22, 3
      %p194 = pnand %p192, %p193
      %p195 = pneg %p194
      // Predicated region
      $region9: #{tpu_custom_call.1} parent=5 // pred_check
        _
      $region10: #{tpu_custom_call.1} parent=5 // pred_check_branch
        %197 = sbr.rel (%p194) target = $region12
      $region11: #{tpu_custom_call.1} parent=5 // pred_region
        %s198 = ssub.s32 %s22, 1
        // Predicated region
        $region13: #{tpu_custom_call.1} parent=11 // pred_check
          %p199 = pneg %p95
        $region14: #{tpu_custom_call.1} parent=11 // pred_check_branch
          %201 = sbr.rel (%p199) target = $region16
        $region15: #{tpu_custom_call.1} parent=11 // pred_region
          %203 = vsyncadd [#allocation6], 0
          %s204 = sshll.u32 %s2, 4
          %s205 = int_to_ptr.hbm [resolvable:$true] %s204
          %s206 = sshll.u32 [#allocation7], 4
          %s207 = int_to_ptr.vmem [resolvable:$true] %s206
          %212 = dma.hbm_to_vmem [thread:$0]  %s205, 16384, %s207, [#allocation6], 256, 256, 16
        $region16: #{tpu_custom_call.1} parent=11 // pred_fallthru
          _
        // Predicated region
        $region17: #{tpu_custom_call.1} parent=11 // pred_check
          %p213 = pneg %p116
        $region18: #{tpu_custom_call.1} parent=11 // pred_check_branch
          %215 = sbr.rel (%p213) target = $region20
        $region19: #{tpu_custom_call.1} parent=11 // pred_region
          _
        $region20: #{tpu_custom_call.1} parent=11 // pred_fallthru
          _
        // Predicated region
        $region21: #{tpu_custom_call.1} parent=11 // pred_check
          %p216 = pneg %p137
        $region22: #{tpu_custom_call.1} parent=11 // pred_check_branch
          %218 = sbr.rel (%p216) target = $region24
        $region23: #{tpu_custom_call.1} parent=11 // pred_region
          %220 = vsyncadd [#allocation9], 0
          %s221 = sshll.u32 %s4, 4
          %s222 = int_to_ptr.hbm [resolvable:$true] %s221
          %s223 = sshll.u32 [#allocation8], 4
          %s224 = int_to_ptr.vmem [resolvable:$true] %s223
          %229 = dma.hbm_to_vmem [thread:$0]  %s222, 4096, %s224, [#allocation9], 128, 128, 8
        $region24: #{tpu_custom_call.1} parent=11 // pred_fallthru
          _
        // Predicated region
        $region25: #{tpu_custom_call.1} parent=11 // pred_check
          %p230 = pneg %p158
        $region26: #{tpu_custom_call.1} parent=11 // pred_check_branch
          %232 = sbr.rel (%p230) target = $region28
        $region27: #{tpu_custom_call.1} parent=11 // pred_region
          _
        $region28: #{tpu_custom_call.1} parent=11 // pred_fallthru
          _
      $region12: #{tpu_custom_call.1} parent=5 // pred_fallthru
        _
      %p233 = scmp.lt.s32.totalorder %s22, 2
      // Predicated region
      $region29: #{tpu_custom_call.1} parent=5 // pred_check
        %p234 = pneg %p233
      $region30: #{tpu_custom_call.1} parent=5 // pred_check_branch
        %236 = sbr.rel (%p234) target = $region32
      $region31: #{tpu_custom_call.1} parent=5 // pred_region
        // Predicated region
        $region33: #{tpu_custom_call.1} parent=31 // pred_check
          %p237 = pneg %p42
        $region34: #{tpu_custom_call.1} parent=31 // pred_check_branch
          %239 = sbr.rel (%p237) target = $region36
        $region35: #{tpu_custom_call.1} parent=31 // pred_region
          %s240 = sand.u32 %s32, 1
          %s241 = scalar_lea.sflag [#allocation3], %s240
          %s242 = sand.u32 %s32, 1
          %s243 = smul.addr %s242, 16
          %s244 = scalar_lea.vmem [#allocation2], %s243
          %246 = vsyncadd %s241, 0
          %s247 = smul.addr %s22, 2
          %s248 = smul.addr %s247, 8
          %s249 = scalar_lea.hbm %s0, %s248
          %s251 = sshll.u32 %s249, 4
          %s252 = int_to_ptr.hbm [resolvable:$true] %s251
          %s253 = sshll.u32 %s244, 4
          %s254 = int_to_ptr.vmem [resolvable:$true] %s253
          %256 = dma.hbm_to_vmem [thread:$0]  %s252, 256, %s254, %s241
        $region36: #{tpu_custom_call.1} parent=31 // pred_fallthru
          _
        // Predicated region
        $region37: #{tpu_custom_call.1} parent=31 // pred_check
          %p257 = pneg %p68
        $region38: #{tpu_custom_call.1} parent=31 // pred_check_branch
          %259 = sbr.rel (%p257) target = $region40
        $region39: #{tpu_custom_call.1} parent=31 // pred_region
          %s260 = sand.u32 %s22, 1
          %s261 = scalar_lea.sflag [#allocation6], %s260
          %s262 = sand.u32 %s58, 1
          %s263 = smul.addr %s262, 16
          %s264 = scalar_lea.vmem [#allocation5], %s263
          %266 = vsyncadd %s261, 0
          %s267 = smul.addr %s22, 2
          %s268 = smul.addr %s267, 8
          %s269 = scalar_lea.hbm %s1, %s268
          %s271 = sshll.u32 %s269, 4
          %s272 = int_to_ptr.hbm [resolvable:$true] %s271
          %s273 = sshll.u32 %s264, 4
          %s274 = int_to_ptr.vmem [resolvable:$true] %s273
          %276 = dma.hbm_to_vmem [thread:$0]  %s272, 256, %s274, %s261
        $region40: #{tpu_custom_call.1} parent=31 // pred_fallthru
          _
      $region32: #{tpu_custom_call.1} parent=5 // pred_fallthru
        _
      %p277 = scmp.le.s32.totalorder 1, %s22
      %p278 = scmp.lt.s32.totalorder %s22, 3
      %p279 = pnand %p277, %p278
      %p280 = pneg %p279
      // Predicated region
      $region41: #{tpu_custom_call.1} parent=5 // pred_check
        _
      $region42: #{tpu_custom_call.1} parent=5 // pred_check_branch
        %282 = sbr.rel (%p279) target = $region44
      $region43: #{tpu_custom_call.1} parent=5 // pred_region
        %s283 = ssub.s32 %s22, 1
        %s284 = sand.u32 %s35, 1
        %s285 = scalar_lea.sflag [#allocation3], %s284
        %s286 = sand.u32 %s35, 1
        %s287 = smul.addr %s286, 16
        %s288 = scalar_lea.vmem [#allocation2], %s287
        // Predicated region
        $region45: #{tpu_custom_call.1} parent=43 // pred_check
          %p289 = pneg %p48
        $region46: #{tpu_custom_call.1} parent=43 // pred_check_branch
          %291 = sbr.rel (%p289) target = $region48
        $region47: #{tpu_custom_call.1} parent=43 // pred_region
          %293 = dma.done %s285, 256
        $region48: #{tpu_custom_call.1} parent=43 // pred_fallthru
          _
        %s294 = sand.u32 %s27, 1
        %s295 = scalar_lea.sflag [#allocation6], %s294
        %s296 = sand.u32 %s61, 1
        %s297 = smul.addr %s296, 16
        %s298 = scalar_lea.vmem [#allocation5], %s297
        // Predicated region
        $region49: #{tpu_custom_call.1} parent=43 // pred_check
          %p299 = pneg %p74
        $region50: #{tpu_custom_call.1} parent=43 // pred_check_branch
          %301 = sbr.rel (%p299) target = $region52
        $region51: #{tpu_custom_call.1} parent=43 // pred_region
          %303 = dma.done %s295, 256
        $region52: #{tpu_custom_call.1} parent=43 // pred_fallthru
          _
        // Predicated region
        $region53: #{tpu_custom_call.1} parent=43 // pred_check
          %p304 = pneg %p95
        $region54: #{tpu_custom_call.1} parent=43 // pred_check_branch
          %306 = sbr.rel (%p304) target = $region56
        $region55: #{tpu_custom_call.1} parent=43 // pred_region
          %308 = dma.done [#allocation6], 16384
        $region56: #{tpu_custom_call.1} parent=43 // pred_fallthru
          _
        // Predicated region
        $region57: #{tpu_custom_call.1} parent=43 // pred_check
          %p309 = pneg %p137
        $region58: #{tpu_custom_call.1} parent=43 // pred_check_branch
          %311 = sbr.rel (%p309) target = $region60
        $region59: #{tpu_custom_call.1} parent=43 // pred_region
          %313 = dma.done [#allocation9], 4096
        $region60: #{tpu_custom_call.1} parent=43 // pred_fallthru
          _
        %s314 = sand.u32 %s35, 1
        %s315 = scalar_lea.sflag [#allocation3], %s314
        %s316 = sand.u32 %s35, 1
        %s317 = smul.addr %s316, 16
        %s318 = scalar_lea.vmem [#allocation2], %s317
        %p319 = pneg %p48
        %p320 = pneg %p45
        %s321 = sand.u32 %s27, 1
        %s322 = scalar_lea.sflag [#allocation6], %s321
        %s323 = sand.u32 %s61, 1
        %s324 = smul.addr %s323, 16
        %s325 = scalar_lea.vmem [#allocation5], %s324
        %p326 = pneg %p74
        %p327 = pneg %p71
        %p328 = pneg %p95
        %p329 = pneg %p92
        %p330 = pneg %p116
        %p331 = pneg %p113
        %p332 = pneg %p137
        %p333 = pneg %p134
        %p334 = pneg %p158
        %p335 = pneg %p155
        %p336 = pneg %p184
        %p337 = pneg %p181
        %s338 = sand.u32 %s171, 1
        %s339 = scalar_lea.sflag [#allocation4], %s338
        %s340 = sand.u32 %s171, 1
        %s341 = smul.addr %s340, 8
        %s342 = scalar_lea.vmem [#allocation10], %s341
        %v343 = vld [vmem:[%s288] sm:$0xff]
        %v344 = vld [vmem:[%s288 + $0x8] sm:$0xff]
        %v345 = vld [vmem:[%s298] sm:$0xff]
        %v346 = vld [vmem:[%s298 + $0x8] sm:$0xff]
        %v347 = vld [vmem:[#allocation7] sm:$0xff]
        %v348 = vld [vmem:[#allocation7 + $0x8] sm:$0xff]
        %v349 = vld [vmem:[#allocation7 + $0x10] sm:$0xff]
        %v350 = vld [vmem:[#allocation7 + $0x18] sm:$0xff]
        %v351 = vld [vmem:[#allocation7 + $0x20] sm:$0xff]
        %v352 = vld [vmem:[#allocation7 + $0x28] sm:$0xff]
        %v353 = vld [vmem:[#allocation7 + $0x30] sm:$0xff]
        %v354 = vld [vmem:[#allocation7 + $0x38] sm:$0xff]
        %v355 = vld [vmem:[#allocation7 + $0x40] sm:$0xff]
        %v356 = vld [vmem:[#allocation7 + $0x48] sm:$0xff]
        %v357 = vld [vmem:[#allocation7 + $0x50] sm:$0xff]
        %v358 = vld [vmem:[#allocation7 + $0x58] sm:$0xff]
        %v359 = vld [vmem:[#allocation7 + $0x60] sm:$0xff]
        %v360 = vld [vmem:[#allocation7 + $0x68] sm:$0xff]
        %v361 = vld [vmem:[#allocation7 + $0x70] sm:$0xff]
        %v362 = vld [vmem:[#allocation7 + $0x78] sm:$0xff]
        %v363 = vld [vmem:[#allocation7 + $0x80] sm:$0xff]
        %v364 = vld [vmem:[#allocation7 + $0x88] sm:$0xff]
        %v365 = vld [vmem:[#allocation7 + $0x90] sm:$0xff]
        %v366 = vld [vmem:[#allocation7 + $0x98] sm:$0xff]
        %v367 = vld [vmem:[#allocation7 + $0xa0] sm:$0xff]
        %v368 = vld [vmem:[#allocation7 + $0xa8] sm:$0xff]
        %v369 = vld [vmem:[#allocation7 + $0xb0] sm:$0xff]
        %v370 = vld [vmem:[#allocation7 + $0xb8] sm:$0xff]
        %v371 = vld [vmem:[#allocation7 + $0xc0] sm:$0xff]
        %v372 = vld [vmem:[#allocation7 + $0xc8] sm:$0xff]
        %v373 = vld [vmem:[#allocation7 + $0xd0] sm:$0xff]
        %v374 = vld [vmem:[#allocation7 + $0xd8] sm:$0xff]
        %v375 = vld [vmem:[#allocation7 + $0xe0] sm:$0xff]
        %v376 = vld [vmem:[#allocation7 + $0xe8] sm:$0xff]
        %v377 = vld [vmem:[#allocation7 + $0xf0] sm:$0xff]
        %v378 = vld [vmem:[#allocation7 + $0xf8] sm:$0xff]
        %v379 = vld [vmem:[#allocation7 + $0x100] sm:$0xff]
        %v380 = vld [vmem:[#allocation7 + $0x108] sm:$0xff]
        %v381 = vld [vmem:[#allocation7 + $0x110] sm:$0xff]
        %v382 = vld [vmem:[#allocation7 + $0x118] sm:$0xff]
        %v383 = vld [vmem:[#allocation7 + $0x120] sm:$0xff]
        %v384 = vld [vmem:[#allocation7 + $0x128] sm:$0xff]
        %v385 = vld [vmem:[#allocation7 + $0x130] sm:$0xff]
        %v386 = vld [vmem:[#allocation7 + $0x138] sm:$0xff]
        %v387 = vld [vmem:[#allocation7 + $0x140] sm:$0xff]
        %v388 = vld [vmem:[#allocation7 + $0x148] sm:$0xff]
        %v389 = vld [vmem:[#allocation7 + $0x150] sm:$0xff]
        %v390 = vld [vmem:[#allocation7 + $0x158] sm:$0xff]
        %v391 = vld [vmem:[#allocation7 + $0x160] sm:$0xff]
        %v392 = vld [vmem:[#allocation7 + $0x168] sm:$0xff]
        %v393 = vld [vmem:[#allocation7 + $0x170] sm:$0xff]
        %v394 = vld [vmem:[#allocation7 + $0x178] sm:$0xff]
        %v395 = vld [vmem:[#allocation7 + $0x180] sm:$0xff]
        %v396 = vld [vmem:[#allocation7 + $0x188] sm:$0xff]
        %v397 = vld [vmem:[#allocation7 + $0x190] sm:$0xff]
        %v398 = vld [vmem:[#allocation7 + $0x198] sm:$0xff]
        %v399 = vld [vmem:[#allocation7 + $0x1a0] sm:$0xff]
        %v400 = vld [vmem:[#allocation7 + $0x1a8] sm:$0xff]
        %v401 = vld [vmem:[#allocation7 + $0x1b0] sm:$0xff]
        %v402 = vld [vmem:[#allocation7 + $0x1b8] sm:$0xff]
        %v403 = vld [vmem:[#allocation7 + $0x1c0] sm:$0xff]
        %v404 = vld [vmem:[#allocation7 + $0x1c8] sm:$0xff]
        %v405 = vld [vmem:[#allocation7 + $0x1d0] sm:$0xff]
        %v406 = vld [vmem:[#allocation7 + $0x1d8] sm:$0xff]
        %v407 = vld [vmem:[#allocation7 + $0x1e0] sm:$0xff]
        %v408 = vld [vmem:[#allocation7 + $0x1e8] sm:$0xff]
        %v409 = vld [vmem:[#allocation7 + $0x1f0] sm:$0xff]
        %v410 = vld [vmem:[#allocation7 + $0x1f8] sm:$0xff]
        %v411 = vld [vmem:[#allocation7 + $0x200] sm:$0xff]
        %v412 = vld [vmem:[#allocation7 + $0x208] sm:$0xff]
        %v413 = vld [vmem:[#allocation7 + $0x210] sm:$0xff]
        %v414 = vld [vmem:[#allocation7 + $0x218] sm:$0xff]
        %v415 = vld [vmem:[#allocation7 + $0x220] sm:$0xff]
        %v416 = vld [vmem:[#allocation7 + $0x228] sm:$0xff]
        %v417 = vld [vmem:[#allocation7 + $0x230] sm:$0xff]
        %v418 = vld [vmem:[#allocation7 + $0x238] sm:$0xff]
        %v419 = vld [vmem:[#allocation7 + $0x240] sm:$0xff]
        %v420 = vld [vmem:[#allocation7 + $0x248] sm:$0xff]
        %v421 = vld [vmem:[#allocation7 + $0x250] sm:$0xff]
        %v422 = vld [vmem:[#allocation7 + $0x258] sm:$0xff]
        %v423 = vld [vmem:[#allocation7 + $0x260] sm:$0xff]
        %v424 = vld [vmem:[#allocation7 + $0x268] sm:$0xff]
        %v425 = vld [vmem:[#allocation7 + $0x270] sm:$0xff]
        %v426 = vld [vmem:[#allocation7 + $0x278] sm:$0xff]
        %v427 = vld [vmem:[#allocation7 + $0x280] sm:$0xff]
        %v428 = vld [vmem:[#allocation7 + $0x288] sm:$0xff]
        %v429 = vld [vmem:[#allocation7 + $0x290] sm:$0xff]
        %v430 = vld [vmem:[#allocation7 + $0x298] sm:$0xff]
        %v431 = vld [vmem:[#allocation7 + $0x2a0] sm:$0xff]
        %v432 = vld [vmem:[#allocation7 + $0x2a8] sm:$0xff]
        %v433 = vld [vmem:[#allocation7 + $0x2b0] sm:$0xff]
        %v434 = vld [vmem:[#allocation7 + $0x2b8] sm:$0xff]
        %v435 = vld [vmem:[#allocation7 + $0x2c0] sm:$0xff]
        %v436 = vld [vmem:[#allocation7 + $0x2c8] sm:$0xff]
        %v437 = vld [vmem:[#allocation7 + $0x2d0] sm:$0xff]
        %v438 = vld [vmem:[#allocation7 + $0x2d8] sm:$0xff]
        %v439 = vld [vmem:[#allocation7 + $0x2e0] sm:$0xff]
        %v440 = vld [vmem:[#allocation7 + $0x2e8] sm:$0xff]
        %v441 = vld [vmem:[#allocation7 + $0x2f0] sm:$0xff]
        %v442 = vld [vmem:[#allocation7 + $0x2f8] sm:$0xff]
        %v443 = vld [vmem:[#allocation7 + $0x300] sm:$0xff]
        %v444 = vld [vmem:[#allocation7 + $0x308] sm:$0xff]
        %v445 = vld [vmem:[#allocation7 + $0x310] sm:$0xff]
        %v446 = vld [vmem:[#allocation7 + $0x318] sm:$0xff]
        %v447 = vld [vmem:[#allocation7 + $0x320] sm:$0xff]
        %v448 = vld [vmem:[#allocation7 + $0x328] sm:$0xff]
        %v449 = vld [vmem:[#allocation7 + $0x330] sm:$0xff]
        %v450 = vld [vmem:[#allocation7 + $0x338] sm:$0xff]
        %v451 = vld [vmem:[#allocation7 + $0x340] sm:$0xff]
        %v452 = vld [vmem:[#allocation7 + $0x348] sm:$0xff]
        %v453 = vld [vmem:[#allocation7 + $0x350] sm:$0xff]
        %v454 = vld [vmem:[#allocation7 + $0x358] sm:$0xff]
        %v455 = vld [vmem:[#allocation7 + $0x360] sm:$0xff]
        %v456 = vld [vmem:[#allocation7 + $0x368] sm:$0xff]
        %v457 = vld [vmem:[#allocation7 + $0x370] sm:$0xff]
        %v458 = vld [vmem:[#allocation7 + $0x378] sm:$0xff]
        %v459 = vld [vmem:[#allocation7 + $0x380] sm:$0xff]
        %v460 = vld [vmem:[#allocation7 + $0x388] sm:$0xff]
        %v461 = vld [vmem:[#allocation7 + $0x390] sm:$0xff]
        %v462 = vld [vmem:[#allocation7 + $0x398] sm:$0xff]
        %v463 = vld [vmem:[#allocation7 + $0x3a0] sm:$0xff]
        %v464 = vld [vmem:[#allocation7 + $0x3a8] sm:$0xff]
        %v465 = vld [vmem:[#allocation7 + $0x3b0] sm:$0xff]
        %v466 = vld [vmem:[#allocation7 + $0x3b8] sm:$0xff]
        %v467 = vld [vmem:[#allocation7 + $0x3c0] sm:$0xff]
        %v468 = vld [vmem:[#allocation7 + $0x3c8] sm:$0xff]
        %v469 = vld [vmem:[#allocation7 + $0x3d0] sm:$0xff]
        %v470 = vld [vmem:[#allocation7 + $0x3d8] sm:$0xff]
        %v471 = vld [vmem:[#allocation7 + $0x3e0] sm:$0xff]
        %v472 = vld [vmem:[#allocation7 + $0x3e8] sm:$0xff]
        %v473 = vld [vmem:[#allocation7 + $0x3f0] sm:$0xff]
        %v474 = vld [vmem:[#allocation7 + $0x3f8] sm:$0xff]
        %475 = vmatpush.msra.mxu0 %v441
        %476 = vmatpush.msra.mxu0 %v439
        %477 = vmatpush.msra.mxu0 %v437
        %478 = vmatpush.msra.mxu0 %v435
        %479 = vmatpush.msra.mxu0 %v433
        %480 = vmatpush.msra.mxu0 %v431
        %481 = vmatpush.msra.mxu0 %v429
        %482 = vmatpush.msra.mxu0 %v427
        %483 = vmatpush.msra.mxu0 %v425
        %484 = vmatpush.msra.mxu0 %v423
        %485 = vmatpush.msra.mxu0 %v421
        %486 = vmatpush.msra.mxu0 %v419
        %487 = vmatpush.msra.mxu0 %v417
        %488 = vmatpush.msra.mxu0 %v415
        %489 = vmatpush.msra.mxu0 %v413
        %490 = vmatpush.msra.mxu0 %v411
        %491 = vmatmul.f32.gmra.mxu0 %v345
        %v492 = vpop.f32.mrf.mxu0
        %v493 = vadd.f32 0.0, %v492
        %494 = vdwg.mxu0
        %495 = vmatpush.msra.mxu0 %v473
        %496 = vmatpush.msra.mxu0 %v471
        %497 = vmatpush.msra.mxu0 %v469
        %498 = vmatpush.msra.mxu0 %v467
        %499 = vmatpush.msra.mxu0 %v465
        %500 = vmatpush.msra.mxu0 %v463
        %501 = vmatpush.msra.mxu0 %v461
        %502 = vmatpush.msra.mxu0 %v459
        %503 = vmatpush.msra.mxu0 %v457
        %504 = vmatpush.msra.mxu0 %v455
        %505 = vmatpush.msra.mxu0 %v453
        %506 = vmatpush.msra.mxu0 %v451
        %507 = vmatpush.msra.mxu0 %v449
        %508 = vmatpush.msra.mxu0 %v447
        %509 = vmatpush.msra.mxu0 %v445
        %510 = vmatpush.msra.mxu0 %v443
        %511 = vmatmul.f32.gmra.mxu0 %v346
        %v512 = vpop.f32.mrf.mxu0
        %v513 = vadd.f32 %v493, %v512
        %514 = vdwg.mxu0
        %515 = vmatpush.msra.mxu0 %v442
        %516 = vmatpush.msra.mxu0 %v440
        %517 = vmatpush.msra.mxu0 %v438
        %518 = vmatpush.msra.mxu0 %v436
        %519 = vmatpush.msra.mxu0 %v434
        %520 = vmatpush.msra.mxu0 %v432
        %521 = vmatpush.msra.mxu0 %v430
        %522 = vmatpush.msra.mxu0 %v428
        %523 = vmatpush.msra.mxu0 %v426
        %524 = vmatpush.msra.mxu0 %v424
        %525 = vmatpush.msra.mxu0 %v422
        %526 = vmatpush.msra.mxu0 %v420
        %527 = vmatpush.msra.mxu0 %v418
        %528 = vmatpush.msra.mxu0 %v416
        %529 = vmatpush.msra.mxu0 %v414
        %530 = vmatpush.msra.mxu0 %v412
        %531 = vmatmul.f32.gmra.mxu0 %v345
        %v532 = vpop.f32.mrf.mxu0
        %v533 = vadd.f32 0.0, %v532
        %534 = vdwg.mxu0
        %535 = vmatpush.msra.mxu0 %v474
        %536 = vmatpush.msra.mxu0 %v472
        %537 = vmatpush.msra.mxu0 %v470
        %538 = vmatpush.msra.mxu0 %v468
        %539 = vmatpush.msra.mxu0 %v466
        %540 = vmatpush.msra.mxu0 %v464
        %541 = vmatpush.msra.mxu0 %v462
        %542 = vmatpush.msra.mxu0 %v460
        %543 = vmatpush.msra.mxu0 %v458
        %544 = vmatpush.msra.mxu0 %v456
        %545 = vmatpush.msra.mxu0 %v454
        %546 = vmatpush.msra.mxu0 %v452
        %547 = vmatpush.msra.mxu0 %v450
        %548 = vmatpush.msra.mxu0 %v448
        %549 = vmatpush.msra.mxu0 %v446
        %550 = vmatpush.msra.mxu0 %v444
        %551 = vmatmul.f32.gmra.mxu0 %v346
        %v552 = vpop.f32.mrf.mxu0
        %v553 = vadd.f32 %v533, %v552
        %554 = vdwg.mxu0
        %555 = vmatpush.msra.mxu0 %v377
        %556 = vmatpush.msra.mxu0 %v375
        %557 = vmatpush.msra.mxu0 %v373
        %558 = vmatpush.msra.mxu0 %v371
        %559 = vmatpush.msra.mxu0 %v369
        %560 = vmatpush.msra.mxu0 %v367
        %561 = vmatpush.msra.mxu0 %v365
        %562 = vmatpush.msra.mxu0 %v363
        %563 = vmatpush.msra.mxu0 %v361
        %564 = vmatpush.msra.mxu0 %v359
        %565 = vmatpush.msra.mxu0 %v357
        %566 = vmatpush.msra.mxu0 %v355
        %567 = vmatpush.msra.mxu0 %v353
        %568 = vmatpush.msra.mxu0 %v351
        %569 = vmatpush.msra.mxu0 %v349
        %570 = vmatpush.msra.mxu0 %v347
        %571 = vmatmul.f32.gmra.mxu0 %v343
        %v572 = vpop.f32.mrf.mxu0
        %v573 = vadd.f32 %v513, %v572
        %574 = vdwg.mxu0
        %575 = vmatpush.msra.mxu0 %v409
        %576 = vmatpush.msra.mxu0 %v407
        %577 = vmatpush.msra.mxu0 %v405
        %578 = vmatpush.msra.mxu0 %v403
        %579 = vmatpush.msra.mxu0 %v401
        %580 = vmatpush.msra.mxu0 %v399
        %581 = vmatpush.msra.mxu0 %v397
        %582 = vmatpush.msra.mxu0 %v395
        %583 = vmatpush.msra.mxu0 %v393
        %584 = vmatpush.msra.mxu0 %v391
        %585 = vmatpush.msra.mxu0 %v389
        %586 = vmatpush.msra.mxu0 %v387
        %587 = vmatpush.msra.mxu0 %v385
        %588 = vmatpush.msra.mxu0 %v383
        %589 = vmatpush.msra.mxu0 %v381
        %590 = vmatpush.msra.mxu0 %v379
        %591 = vmatmul.f32.gmra.mxu0 %v344
        %v592 = vpop.f32.mrf.mxu0
        %v593 = vadd.f32 %v573, %v592
        %594 = vdwg.mxu0
        %595 = vmatpush.msra.mxu0 %v378
        %596 = vmatpush.msra.mxu0 %v376
        %597 = vmatpush.msra.mxu0 %v374
        %598 = vmatpush.msra.mxu0 %v372
        %599 = vmatpush.msra.mxu0 %v370
        %600 = vmatpush.msra.mxu0 %v368
        %601 = vmatpush.msra.mxu0 %v366
        %602 = vmatpush.msra.mxu0 %v364
        %603 = vmatpush.msra.mxu0 %v362
        %604 = vmatpush.msra.mxu0 %v360
        %605 = vmatpush.msra.mxu0 %v358
        %606 = vmatpush.msra.mxu0 %v356
        %607 = vmatpush.msra.mxu0 %v354
        %608 = vmatpush.msra.mxu0 %v352
        %609 = vmatpush.msra.mxu0 %v350
        %610 = vmatpush.msra.mxu0 %v348
        %611 = vmatmul.f32.gmra.mxu0 %v343
        %v612 = vpop.f32.mrf.mxu0
        %v613 = vadd.f32 %v553, %v612
        %614 = vdwg.mxu0
        %615 = vmatpush.msra.mxu0 %v410
        %616 = vmatpush.msra.mxu0 %v408
        %617 = vmatpush.msra.mxu0 %v406
        %618 = vmatpush.msra.mxu0 %v404
        %619 = vmatpush.msra.mxu0 %v402
        %620 = vmatpush.msra.mxu0 %v400
        %621 = vmatpush.msra.mxu0 %v398
        %622 = vmatpush.msra.mxu0 %v396
        %623 = vmatpush.msra.mxu0 %v394
        %624 = vmatpush.msra.mxu0 %v392
        %625 = vmatpush.msra.mxu0 %v390
        %626 = vmatpush.msra.mxu0 %v388
        %627 = vmatpush.msra.mxu0 %v386
        %628 = vmatpush.msra.mxu0 %v384
        %629 = vmatpush.msra.mxu0 %v382
        %630 = vmatpush.msra.mxu0 %v380
        %631 = vmatmul.f32.gmra.mxu0 %v344
        %v632 = vpop.f32.mrf.mxu0
        %v633 = vadd.f32 %v613, %v632
        %634 = vdwg.mxu0
        %v635 = vld [vmem:[%s3] sm:$0x3]
        %v637 = vperm.slane %v635, 0
        %v638 = vperm.slane %v635, 1
        %v641 = vadd.f32 %v593, %v637
        %v642 = vadd.f32 %v633, %v638
        %v643 = vmax.f32 %v641, 0.0
        %v644 = vmax.f32 %v642, 0.0
        %v645 = vld [vmem:[#allocation8] sm:$0xff]
        %v646 = vld [vmem:[#allocation8 + $0x8] sm:$0xff]
        %v647 = vld [vmem:[#allocation8 + $0x10] sm:$0xff]
        %v648 = vld [vmem:[#allocation8 + $0x18] sm:$0xff]
        %v649 = vld [vmem:[#allocation8 + $0x20] sm:$0xff]
        %v650 = vld [vmem:[#allocation8 + $0x28] sm:$0xff]
        %v651 = vld [vmem:[#allocation8 + $0x30] sm:$0xff]
        %v652 = vld [vmem:[#allocation8 + $0x38] sm:$0xff]
        %v653 = vld [vmem:[#allocation8 + $0x40] sm:$0xff]
        %v654 = vld [vmem:[#allocation8 + $0x48] sm:$0xff]
        %v655 = vld [vmem:[#allocation8 + $0x50] sm:$0xff]
        %v656 = vld [vmem:[#allocation8 + $0x58] sm:$0xff]
        %v657 = vld [vmem:[#allocation8 + $0x60] sm:$0xff]
        %v658 = vld [vmem:[#allocation8 + $0x68] sm:$0xff]
        %v659 = vld [vmem:[#allocation8 + $0x70] sm:$0xff]
        %v660 = vld [vmem:[#allocation8 + $0x78] sm:$0xff]
        %v661 = vld [vmem:[#allocation8 + $0x80] sm:$0xff]
        %v662 = vld [vmem:[#allocation8 + $0x88] sm:$0xff]
        %v663 = vld [vmem:[#allocation8 + $0x90] sm:$0xff]
        %v664 = vld [vmem:[#allocation8 + $0x98] sm:$0xff]
        %v665 = vld [vmem:[#allocation8 + $0xa0] sm:$0xff]
        %v666 = vld [vmem:[#allocation8 + $0xa8] sm:$0xff]
        %v667 = vld [vmem:[#allocation8 + $0xb0] sm:$0xff]
        %v668 = vld [vmem:[#allocation8 + $0xb8] sm:$0xff]
        %v669 = vld [vmem:[#allocation8 + $0xc0] sm:$0xff]
        %v670 = vld [vmem:[#allocation8 + $0xc8] sm:$0xff]
        %v671 = vld [vmem:[#allocation8 + $0xd0] sm:$0xff]
        %v672 = vld [vmem:[#allocation8 + $0xd8] sm:$0xff]
        %v673 = vld [vmem:[#allocation8 + $0xe0] sm:$0xff]
        %v674 = vld [vmem:[#allocation8 + $0xe8] sm:$0xff]
        %v675 = vld [vmem:[#allocation8 + $0xf0] sm:$0xff]
        %v676 = vld [vmem:[#allocation8 + $0xf8] sm:$0xff]
        %v677 = vld [vmem:[%s5] sm:$0x1]
        %v679 = vperm.slane %v677, 0
        %681 = vmatpush.msra.mxu0 %v660
        %682 = vmatpush.msra.mxu0 %v659
        %683 = vmatpush.msra.mxu0 %v658
        %684 = vmatpush.msra.mxu0 %v657
        %685 = vmatpush.msra.mxu0 %v656
        %686 = vmatpush.msra.mxu0 %v655
        %687 = vmatpush.msra.mxu0 %v654
        %688 = vmatpush.msra.mxu0 %v653
        %689 = vmatpush.msra.mxu0 %v652
        %690 = vmatpush.msra.mxu0 %v651
        %691 = vmatpush.msra.mxu0 %v650
        %692 = vmatpush.msra.mxu0 %v649
        %693 = vmatpush.msra.mxu0 %v648
        %694 = vmatpush.msra.mxu0 %v647
        %695 = vmatpush.msra.mxu0 %v646
        %696 = vmatpush.msra.mxu0 %v645
        %697 = vmatmul.f32.gmra.mxu0 %v643
        %v698 = vpop.f32.mrf.mxu0
        %v699 = vadd.f32 %v679, %v698
        %700 = vdwg.mxu0
        %701 = vmatpush.msra.mxu0 %v676
        %702 = vmatpush.msra.mxu0 %v675
        %703 = vmatpush.msra.mxu0 %v674
        %704 = vmatpush.msra.mxu0 %v673
        %705 = vmatpush.msra.mxu0 %v672
        %706 = vmatpush.msra.mxu0 %v671
        %707 = vmatpush.msra.mxu0 %v670
        %708 = vmatpush.msra.mxu0 %v669
        %709 = vmatpush.msra.mxu0 %v668
        %710 = vmatpush.msra.mxu0 %v667
        %711 = vmatpush.msra.mxu0 %v666
        %712 = vmatpush.msra.mxu0 %v665
        %713 = vmatpush.msra.mxu0 %v664
        %714 = vmatpush.msra.mxu0 %v663
        %715 = vmatpush.msra.mxu0 %v662
        %716 = vmatpush.msra.mxu0 %v661
        %717 = vmatmul.f32.gmra.mxu0 %v644
        %v718 = vpop.f32.mrf.mxu0
        %v719 = vadd.f32 %v699, %v718
        %720 = vdwg.mxu0
        %721 = vst [vmem:[%s342] sm:$0xff] %v719
        %s722 = sand.u32 %s171, 1
        %s723 = scalar_lea.sflag [#allocation4], %s722
        %s724 = sand.u32 %s171, 1
        %s725 = smul.addr %s724, 8
        %s726 = scalar_lea.vmem [#allocation10], %s725
        // Predicated region
        $region61: #{tpu_custom_call.1} parent=43 // pred_check
          %p727 = pneg %p181
        $region62: #{tpu_custom_call.1} parent=43 // pred_check_branch
          %729 = sbr.rel (%p727) target = $region64
        $region63: #{tpu_custom_call.1} parent=43 // pred_region
          %731 = vsyncadd %s723, 0
          %s732 = smul.addr %s27, 8
          %s733 = scalar_lea.hbm %s6, %s732
          %s735 = sshll.u32 %s726, 4
          %s736 = int_to_ptr.vmem [resolvable:$true] %s735
          %s737 = sshll.u32 %s733, 4
          %s738 = int_to_ptr.hbm [resolvable:$true] %s737
          %740 = dma.vmem_to_hbm [thread:$0]  %s736, 128, %s738, %s723
        $region64: #{tpu_custom_call.1} parent=43 // pred_fallthru
          _
      $region44: #{tpu_custom_call.1} parent=5 // pred_fallthru
        _
      %p741 = scmp.le.s32.totalorder 2, %s22
      // Predicated region
      $region65: #{tpu_custom_call.1} parent=5 // pred_check
        %p742 = pneg %p741
      $region66: #{tpu_custom_call.1} parent=5 // pred_check_branch
        %744 = sbr.rel (%p742) target = $region68
      $region67: #{tpu_custom_call.1} parent=5 // pred_region
        %s745 = ssub.s32 %s22, 2
        // Predicated region
        $region69: #{tpu_custom_call.1} parent=67 // pred_check
          %p746 = pneg %p187
        $region70: #{tpu_custom_call.1} parent=67 // pred_check_branch
          %748 = sbr.rel (%p746) target = $region72
        $region71: #{tpu_custom_call.1} parent=67 // pred_region
          %s749 = sand.u32 %s172, 1
          %s750 = scalar_lea.sflag [#allocation4], %s749
          %s751 = sand.u32 %s172, 1
          %s752 = smul.addr %s751, 8
          %s753 = scalar_lea.vmem [#allocation10], %s752
          %755 = dma.done %s750, 128
        $region72: #{tpu_custom_call.1} parent=67 // pred_fallthru
          _
      $region68: #{tpu_custom_call.1} parent=5 // pred_fallthru
        _
    $region6: #{tpu_custom_call.1} parent=1 // loop_footer
      %s26 = sadd.s32 1, %s22
    $region7: #{tpu_custom_call.1} parent=1 // loop_footer_branch
      %21 = sbr.rel target = $region3
    $region8: #{tpu_custom_call.1} parent=1 // loop_exit
      _
    %756 = vsyncpa [#allocation3], 1
    %s757 = scalar_lea.sflag [#allocation3], 1
    %758 = vsyncpa %s757, 1
    %759 = vsyncpa [#allocation6], 1
    %s760 = scalar_lea.sflag [#allocation6], 1
    %761 = vsyncpa %s760, 1
    %762 = vsyncpa [#allocation9], 1
    %763 = vsyncpa [#allocation4], 1
    %s764 = scalar_lea.sflag [#allocation4], 1
    %765 = vsyncpa %s764, 1

</llo_original>
